<compile_context>
chip_gen: v6e
topology: v6e:2x2x1
jax: 0.10.0
libtpu: 0.0.40
codegen_flags: <defaults>
</compile_context>

<pallas_src>
import numpy as np
import jax
import jax.numpy as jnp
from jax import lax
from jax.experimental import pallas as pl
from jax.experimental.pallas import tpu as pltpu


def _make_kernel(batch_block: int, eps: float):
    """Fused conv-GEMM + cumulative LayerNorm + PReLU kernel body (per batch block)."""

    def kernel(p_ref, w_ref, b_ref, g_ref, be_ref, a_ref,
               pool_ref, bcast_ref, fbc_ref, invc_ref, o_ref):
        # p_ref    : (B_blk, K_pad, TFp)  im2col patches (zero-padded K / TF tails)
        # w_ref    : (C_out, K_pad)       conv weight as GEMM matrix
        # b_ref    : (C_out, 1)           conv bias
        # g_ref    : (C_out, F)           cLN gain   (untiled; broadcast in-kernel)
        # be_ref   : (C_out, F)           cLN bias
        # a_ref    : (C_out, F)           PReLU slope
        # pool_ref : (TFp, T)             causal prefix-pool: 1 iff s valid and t(s) <= t
        # bcast_ref: (T, TFp)             time -> (t,f) one-hot broadcast
        # fbc_ref  : (F, TFp)             freq -> (t,f) one-hot broadcast
        # invc_ref : (1, T)               1 / entry_cnt(t) = 1 / ((t+1) * C_out * F)
        # o_ref    : (B_blk, C_out, TFp)  fused output (lane axis = TFp -> lane-dense)

        # Hoisted once per grid step: broadcast the per-(C, F) params to the
        # (C_out, TFp) working layout with tiny MXU matmuls.
        fbc = fbc_ref[...]
        g_tf = jnp.dot(g_ref[...], fbc, preferred_element_type=jnp.float32)
        be_tf = jnp.dot(be_ref[...], fbc, preferred_element_type=jnp.float32)
        a_tf = jnp.dot(a_ref[...], fbc, preferred_element_type=jnp.float32)

        w = w_ref[...]
        bias = b_ref[...]
        pool = pool_ref[...]
        bcast = bcast_ref[...]
        inv_cnt = invc_ref[...]

        for b in range(batch_block):            # static unroll over the batch block
            # ---- convolution: one MXU GEMM + bias per element ----
            y = jnp.dot(w, p_ref[b], preferred_element_type=jnp.float32) + bias

            # ---- cumulative LayerNorm statistics, in T-space (no TFxTF mask) ----
            s = jnp.sum(y, axis=0, keepdims=True)            # (1, TFp) sum over C
            q = jnp.sum(y * y, axis=0, keepdims=True)        # (1, TFp) sum of squares
            cum_s = jnp.dot(s, pool, preferred_element_type=jnp.float32)   # (1, T)
            cum_q = jnp.dot(q, pool, preferred_element_type=jnp.float32)   # (1, T)

            mean_t = cum_s * inv_cnt
            var_t = (cum_q - 2.0 * mean_t * cum_s) * inv_cnt + mean_t * mean_t
            inv_std_t = lax.rsqrt(var_t + eps)               # EUP, (1, T) only

            # Broadcast the (1, T) stats back onto the (t, f) lane axis via matmul.
            mean_tf = jnp.dot(mean_t, bcast, preferred_element_type=jnp.float32)
            istd_tf = jnp.dot(inv_std_t, bcast, preferred_element_type=jnp.float32)

            # ---- normalize + affine + PReLU (multiplies only, no divides) ----
            z = (y - mean_tf) * istd_tf * g_tf + be_tf
            out = jnp.maximum(z, 0.0) + a_tf * jnp.minimum(z, 0.0)
            o_ref[b] = out.astype(o_ref.dtype)

    return kernel


def frnet_conv2d(x, weight, bias, gain, ln_bias, prelu_a, *, stride, eps=1e-5,
                 batch_block=None):
    """Pallas forward of FRNetLite Conv2d: causal pad -> conv -> cLN -> PReLU.

    x        : (N, C_in, H, W)     NCHW, as in PyTorch
    weight   : (C_out, C_in, kh, kw)
    bias     : (C_out,)
    gain     : (1, C_out, 1, F)    CumulativeLayerNorm2d gain
    ln_bias  : (1, C_out, 1, F)    CumulativeLayerNorm2d bias
    prelu_a  : (1, C_out, 1, F)    PReLU2d slope
    returns  : (N, C_out, T, F)    NCHW (T == H for stride-1 causal padding)
    """
    n, c_in, h, width = x.shape
    c_out, _, kh, kw = weight.shape
    sh, sw = stride
    pad = kh - sh                            # Pad2d(kernel_size[0] - stride[0]), top of H
    h_pad = h + pad
    t = (h_pad - kh) // sh + 1               # output time steps
    f = (width - kw) // sw + 1               # output freq bins == feature_size
    k = c_in * kh * kw
    tf = t * f

    # Aligned tile sizes: lane-dense output stores and aligned GEMM operands.
    tfp = ((tf + 127) // 128) * 128
    kp = ((k + 7) // 8) * 8

    # Batch blocking: amortize per-grid-step overhead; size from a VMEM budget
    # (double-buffered patches + output per element), conservative for v7x (64 MiB).
    if batch_block is None:
        per_elem = 4 * (kp * tfp + c_out * tfp)
        budget_elems = max(1, (40 * 1024 * 1024) // (2 * per_elem))
        batch_block = max(1, min(n, int(budget_elems), 32))
    n_pad = ((n + batch_block - 1) // batch_block) * batch_block
    n_blocks = n_pad // batch_block

    # ---------- transpose-free im2col (NCHW slicing only) ----------
    x_p = jnp.pad(x, ((0, 0), (0, 0), (pad, 0), (0, 0)))                # causal pad on H
    taps = []
    for dy in range(kh):
        for dx in range(kw):
            taps.append(x_p[:, :, dy:dy + sh * (t - 1) + 1:sh,
                                  dx:dx + sw * (f - 1) + 1:sw])         # (N, C_in, T, F)
    patches = jnp.stack(taps, axis=2)                                   # (N, C_in, kh*kw, T, F)
    patches = patches.reshape(n, k, tf)                                 # K order = (c_in, dy, dx)
    patches = jnp.pad(patches, ((0, n_pad - n), (0, kp - k), (0, tfp - tf)))

    # Weight matrix is a plain reshape (same (c_in, dy, dx) K ordering).
    w_mat = jnp.pad(weight.reshape(c_out, k), ((0, 0), (0, kp - k)))
    b_col = bias.reshape(c_out, 1)

    g_cf = gain.reshape(c_out, f)
    be_cf = ln_bias.reshape(c_out, f)
    a_cf = prelu_a.reshape(c_out, f)

    # ---------- constant T-space prefix / broadcast matrices ----------
    s_idx = np.arange(tfp)
    valid = s_idx < tf
    t_of_s = np.minimum(s_idx // f, t - 1)
    f_of_s = s_idx % f
    pool = ((t_of_s[:, None] <= np.arange(t)[None, :]) & valid[:, None]).astype(np.float32)
    bcast = ((t_of_s[None, :] == np.arange(t)[:, None]) & valid[None, :]).astype(np.float32)
    fbc = ((f_of_s[None, :] == np.arange(f)[:, None]) & valid[None, :]).astype(np.float32)
    inv_cnt = (1.0 / (c_out * f * np.arange(1, t + 1, dtype=np.float64))
               ).astype(np.float32).reshape(1, t)

    kernel = _make_kernel(batch_block, float(eps))

    # VMEM: double-buffered per-block tensors + resident constants, with headroom.
    vmem_need = 4 * (2 * batch_block * (kp + c_out) * tfp
                     + 2 * (c_out * kp + c_out + 3 * c_out * f
                            + 2 * t * tfp + f * tfp + t))
    vmem_limit = int(min(max(4 * vmem_need, 16 * 1024 * 1024), 48 * 1024 * 1024))

    const = lambda i: (0, 0)
    out = pl.pallas_call(
        kernel,
        out_shape=jax.ShapeDtypeStruct((n_pad, c_out, tfp), x.dtype),
        grid_spec=pltpu.PrefetchScalarGridSpec(
            num_scalar_prefetch=0,
            grid=(n_blocks,),                                # batch blocks per step
            in_specs=[
                pl.BlockSpec((batch_block, kp, tfp), lambda i: (i, 0, 0)),
                pl.BlockSpec((c_out, kp), const),
                pl.BlockSpec((c_out, 1), const),
                pl.BlockSpec((c_out, f), const),
                pl.BlockSpec((c_out, f), const),
                pl.BlockSpec((c_out, f), const),
                pl.BlockSpec((tfp, t), const),
                pl.BlockSpec((t, tfp), const),
                pl.BlockSpec((f, tfp), const),
                pl.BlockSpec((1, t), const),
            ],
            out_specs=pl.BlockSpec((batch_block, c_out, tfp), lambda i: (i, 0, 0)),
        ),
        compiler_params=pltpu.CompilerParams(
            dimension_semantics=("parallel",),               # shard batch blocks over TCs
            vmem_limit_bytes=vmem_limit,
        ),
    )(
        patches.astype(jnp.float32),
        w_mat.astype(jnp.float32),
        b_col.astype(jnp.float32),
        g_cf.astype(jnp.float32),
        be_cf.astype(jnp.float32),
        a_cf.astype(jnp.float32),
        jnp.asarray(pool),
        jnp.asarray(bcast),
        jnp.asarray(fbc),
        jnp.asarray(inv_cnt),
    )

    return out[:n, :, :tf].reshape(n, c_out, t, f)


def _reference_forward(x, weight, bias, gain, ln_bias, prelu_a, stride, eps=1e-5):
    """Pure-JAX mirror of the PyTorch module (pad -> conv -> cLN -> PReLU)."""
    sh, sw = stride
    kh = weight.shape[2]
    pad = kh - sh
    xp = jnp.pad(x, ((0, 0), (0, 0), (pad, 0), (0, 0)))
    y = lax.conv_general_dilated(
        xp, weight, window_strides=(sh, sw), padding="VALID",
        dimension_numbers=("NCHW", "OIHW", "NCHW"))
    y = y + bias.reshape(1, -1, 1, 1)
    _, c, t, f = y.shape
    step_sum = jnp.sum(y, axis=(1, 3), keepdims=True)
    step_pow = jnp.sum(y * y, axis=(1, 3), keepdims=True)
    cum_sum = jnp.cumsum(step_sum, axis=2)
    cum_pow = jnp.cumsum(step_pow, axis=2)
    cnt = (c * f) * jnp.arange(1, t + 1, dtype=y.dtype).reshape(1, 1, t, 1)
    cum_mean = cum_sum / cnt
    cum_var = (cum_pow - 2.0 * cum_mean * cum_sum) / cnt + cum_mean ** 2
    cum_std = jnp.sqrt(cum_var + eps)
    z = (y - cum_mean) / cum_std * gain + ln_bias
    return jnp.maximum(z, 0.0) + prelu_a * jnp.minimum(z, 0.0)


if __name__ == "__main__":
    key = jax.random.PRNGKey(0)
    ks = jax.random.split(key, 6)

    # Small shapes consistent with the module's forward.
    N, C_IN, H, W = 2, 4, 16, 16
    C_OUT = 8
    KH, KW = 3, 3
    STRIDE = (1, 1)
    FEAT = (W - KW) // STRIDE[1] + 1          # feature_size = 14

    x = jax.random.normal(ks[0], (N, C_IN, H, W), jnp.float32)
    weight = 0.2 * jax.random.normal(ks[1], (C_OUT, C_IN, KH, KW), jnp.float32)
    bias = 0.1 * jax.random.normal(ks[2], (C_OUT,), jnp.float32)
    # Affine / PReLU parameters (random perturbations of the module's init values).
    gain = 1.0 + 0.1 * jax.random.normal(ks[3], (1, C_OUT, 1, FEAT), jnp.float32)
    ln_bias = 0.1 * jax.random.normal(ks[4], (1, C_OUT, 1, FEAT), jnp.float32)
    prelu_a = 0.25 + 0.05 * jax.random.normal(ks[5], (1, C_OUT, 1, FEAT), jnp.float32)

    y = frnet_conv2d(x, weight, bias, gain, ln_bias, prelu_a, stride=STRIDE)
    y = jax.block_until_ready(y)

    y_ref = jax.block_until_ready(
        _reference_forward(x, weight, bias, gain, ln_bias, prelu_a, STRIDE))

    assert y.shape == (N, C_OUT, H, FEAT), y.shape
    max_err = float(jnp.max(jnp.abs(y - y_ref)))
    assert jnp.allclose(y, y_ref, atol=2e-4, rtol=2e-4), (
        f"Pallas Conv2d block mismatch vs reference, max abs err = {max_err}")

    print("KERNEL_OK")
</pallas_src>

<mosaic_0001>
module attributes {stable_mosaic.version = 11 : i64} {
  func.func @kernel(%arg0: i32, %arg1: memref<2x40x256xf32, #tpu.memory_space<vmem>>, %arg2: memref<8x40xf32, #tpu.memory_space<vmem>>, %arg3: memref<8x1xf32, #tpu.memory_space<vmem>>, %arg4: memref<8x14xf32, #tpu.memory_space<vmem>>, %arg5: memref<8x14xf32, #tpu.memory_space<vmem>>, %arg6: memref<8x14xf32, #tpu.memory_space<vmem>>, %arg7: memref<256x16xf32, #tpu.memory_space<vmem>>, %arg8: memref<16x256xf32, #tpu.memory_space<vmem>>, %arg9: memref<14x256xf32, #tpu.memory_space<vmem>>, %arg10: memref<1x16xf32, #tpu.memory_space<vmem>>, %arg11: memref<2x8x256xf32, #tpu.memory_space<vmem>>) attributes {dimension_semantics = [#tpu.dimension_semantics<parallel>], iteration_bounds = array<i64: 1>, scalar_prefetch = 0 : i64, scratch_operands = 0 : i64, tpu.core_type = #tpu.core_type<tc>, window_params = [{transform_indices = @transform_0, window_bounds = array<i64: 2, 40, 256>}, {pipeline_mode = #tpu.pipeline_mode<synchronous>, transform_indices = @transform_1, window_bounds = array<i64: 8, 40>}, {pipeline_mode = #tpu.pipeline_mode<synchronous>, transform_indices = @transform_2, window_bounds = array<i64: 8, 1>}, {pipeline_mode = #tpu.pipeline_mode<synchronous>, transform_indices = @transform_3, window_bounds = array<i64: 8, 14>}, {pipeline_mode = #tpu.pipeline_mode<synchronous>, transform_indices = @transform_4, window_bounds = array<i64: 8, 14>}, {pipeline_mode = #tpu.pipeline_mode<synchronous>, transform_indices = @transform_5, window_bounds = array<i64: 8, 14>}, {pipeline_mode = #tpu.pipeline_mode<synchronous>, transform_indices = @transform_6, window_bounds = array<i64: 256, 16>}, {pipeline_mode = #tpu.pipeline_mode<synchronous>, transform_indices = @transform_7, window_bounds = array<i64: 16, 256>}, {pipeline_mode = #tpu.pipeline_mode<synchronous>, transform_indices = @transform_8, window_bounds = array<i64: 14, 256>}, {pipeline_mode = #tpu.pipeline_mode<synchronous>, transform_indices = @transform_9, window_bounds = array<i64: 1, 16>}, {transform_indices = @transform_10, window_bounds = array<i64: 2, 8, 256>}]} {
    %c0 = arith.constant 0 : index
    %c0_0 = arith.constant 0 : index
    %0 = vector.load %arg9[%c0, %c0_0] : memref<14x256xf32, #tpu.memory_space<vmem>>, vector<14x256xf32>
    %c0_1 = arith.constant 0 : index
    %c0_2 = arith.constant 0 : index
    %1 = vector.load %arg4[%c0_1, %c0_2] : memref<8x14xf32, #tpu.memory_space<vmem>>, vector<8x14xf32>
    %cst = arith.constant dense<0.000000e+00> : vector<8x256xf32>
    %2 = tpu.matmul %1, %0, %cst {dimension_numbers = #tpu.dot_dimension_numbers<[1], [0], [0], [1], [0, 0, 1, 1], [], []>} : vector<8x14xf32>, vector<14x256xf32>, vector<8x256xf32> -> vector<8x256xf32>
    %c0_3 = arith.constant 0 : index
    %c0_4 = arith.constant 0 : index
    %3 = vector.load %arg5[%c0_3, %c0_4] : memref<8x14xf32, #tpu.memory_space<vmem>>, vector<8x14xf32>
    %cst_5 = arith.constant dense<0.000000e+00> : vector<8x256xf32>
    %4 = tpu.matmul %3, %0, %cst_5 {dimension_numbers = #tpu.dot_dimension_numbers<[1], [0], [0], [1], [0, 0, 1, 1], [], []>} : vector<8x14xf32>, vector<14x256xf32>, vector<8x256xf32> -> vector<8x256xf32>
    %c0_6 = arith.constant 0 : index
    %c0_7 = arith.constant 0 : index
    %5 = vector.load %arg6[%c0_6, %c0_7] : memref<8x14xf32, #tpu.memory_space<vmem>>, vector<8x14xf32>
    %cst_8 = arith.constant dense<0.000000e+00> : vector<8x256xf32>
    %6 = tpu.matmul %5, %0, %cst_8 {dimension_numbers = #tpu.dot_dimension_numbers<[1], [0], [0], [1], [0, 0, 1, 1], [], []>} : vector<8x14xf32>, vector<14x256xf32>, vector<8x256xf32> -> vector<8x256xf32>
    %c0_9 = arith.constant 0 : index
    %c0_10 = arith.constant 0 : index
    %7 = vector.load %arg2[%c0_9, %c0_10] : memref<8x40xf32, #tpu.memory_space<vmem>>, vector<8x40xf32>
    %c0_11 = arith.constant 0 : index
    %c0_12 = arith.constant 0 : index
    %8 = vector.load %arg3[%c0_11, %c0_12] : memref<8x1xf32, #tpu.memory_space<vmem>>, vector<8x1xf32>
    %c0_13 = arith.constant 0 : index
    %c0_14 = arith.constant 0 : index
    %9 = vector.load %arg7[%c0_13, %c0_14] : memref<256x16xf32, #tpu.memory_space<vmem>>, vector<256x16xf32>
    %c0_15 = arith.constant 0 : index
    %c0_16 = arith.constant 0 : index
    %10 = vector.load %arg8[%c0_15, %c0_16] : memref<16x256xf32, #tpu.memory_space<vmem>>, vector<16x256xf32>
    %c0_17 = arith.constant 0 : index
    %c0_18 = arith.constant 0 : index
    %11 = vector.load %arg10[%c0_17, %c0_18] : memref<1x16xf32, #tpu.memory_space<vmem>>, vector<1x16xf32>
    %c0_19 = arith.constant 0 : index
    %c0_20 = arith.constant 0 : index
    %c0_21 = arith.constant 0 : index
    %12 = vector.load %arg1[%c0_19, %c0_20, %c0_21] : memref<2x40x256xf32, #tpu.memory_space<vmem>>, vector<1x40x256xf32>
    %13 = vector.shape_cast %12 : vector<1x40x256xf32> to vector<40x256xf32>
    %cst_22 = arith.constant dense<0.000000e+00> : vector<8x256xf32>
    %14 = tpu.matmul %7, %13, %cst_22 {dimension_numbers = #tpu.dot_dimension_numbers<[1], [0], [0], [1], [0, 0, 1, 1], [], []>} : vector<8x40xf32>, vector<40x256xf32>, vector<8x256xf32> -> vector<8x256xf32>
    %15 = vector.broadcast %8 : vector<8x1xf32> to vector<8x256xf32>
    %16 = arith.addf %14, %15 : vector<8x256xf32>
    %cst_23 = arith.constant dense<0.000000e+00> : vector<256xf32>
    %17 = vector.multi_reduction <add>, %16, %cst_23 [0] : vector<8x256xf32> to vector<256xf32>
    %18 = vector.shape_cast %17 : vector<256xf32> to vector<1x256xf32>
    %19 = arith.mulf %16, %16 : vector<8x256xf32>
    %cst_24 = arith.constant dense<0.000000e+00> : vector<256xf32>
    %20 = vector.multi_reduction <add>, %19, %cst_24 [0] : vector<8x256xf32> to vector<256xf32>
    %21 = vector.shape_cast %20 : vector<256xf32> to vector<1x256xf32>
    %cst_25 = arith.constant dense<0.000000e+00> : vector<1x16xf32>
    %22 = tpu.matmul %18, %9, %cst_25 {dimension_numbers = #tpu.dot_dimension_numbers<[1], [0], [0], [1], [0, 0, 1, 1], [], []>} : vector<1x256xf32>, vector<256x16xf32>, vector<1x16xf32> -> vector<1x16xf32>
    %cst_26 = arith.constant dense<0.000000e+00> : vector<1x16xf32>
    %23 = tpu.matmul %21, %9, %cst_26 {dimension_numbers = #tpu.dot_dimension_numbers<[1], [0], [0], [1], [0, 0, 1, 1], [], []>} : vector<1x256xf32>, vector<256x16xf32>, vector<1x16xf32> -> vector<1x16xf32>
    %24 = arith.mulf %22, %11 : vector<1x16xf32>
    %cst_27 = arith.constant 2.000000e+00 : f32
    %25 = vector.broadcast %cst_27 : f32 to vector<1x16xf32>
    %26 = arith.mulf %25, %24 : vector<1x16xf32>
    %27 = arith.mulf %26, %22 : vector<1x16xf32>
    %28 = arith.subf %23, %27 : vector<1x16xf32>
    %29 = arith.mulf %28, %11 : vector<1x16xf32>
    %30 = arith.mulf %24, %24 : vector<1x16xf32>
    %31 = arith.addf %29, %30 : vector<1x16xf32>
    %cst_28 = arith.constant 9.99999974E-6 : f32
    %32 = vector.broadcast %cst_28 : f32 to vector<1x16xf32>
    %33 = arith.addf %31, %32 : vector<1x16xf32>
    %34 = math.rsqrt %33 : vector<1x16xf32>
    %cst_29 = arith.constant dense<0.000000e+00> : vector<1x256xf32>
    %35 = tpu.matmul %24, %10, %cst_29 {dimension_numbers = #tpu.dot_dimension_numbers<[1], [0], [0], [1], [0, 0, 1, 1], [], []>} : vector<1x16xf32>, vector<16x256xf32>, vector<1x256xf32> -> vector<1x256xf32>
    %cst_30 = arith.constant dense<0.000000e+00> : vector<1x256xf32>
    %36 = tpu.matmul %34, %10, %cst_30 {dimension_numbers = #tpu.dot_dimension_numbers<[1], [0], [0], [1], [0, 0, 1, 1], [], []>} : vector<1x16xf32>, vector<16x256xf32>, vector<1x256xf32> -> vector<1x256xf32>
    %37 = vector.broadcast %35 : vector<1x256xf32> to vector<8x256xf32>
    %38 = arith.subf %16, %37 : vector<8x256xf32>
    %39 = vector.broadcast %36 : vector<1x256xf32> to vector<8x256xf32>
    %40 = arith.mulf %38, %39 : vector<8x256xf32>
    %41 = arith.mulf %40, %2 : vector<8x256xf32>
    %42 = arith.addf %41, %4 : vector<8x256xf32>
    %cst_31 = arith.constant 0.000000e+00 : f32
    %43 = vector.broadcast %cst_31 : f32 to vector<8x256xf32>
    %44 = arith.maximumf %42, %43 : vector<8x256xf32>
    %cst_32 = arith.constant 0.000000e+00 : f32
    %45 = vector.broadcast %cst_32 : f32 to vector<8x256xf32>
    %46 = arith.minimumf %42, %45 : vector<8x256xf32>
    %47 = arith.mulf %6, %46 : vector<8x256xf32>
    %48 = arith.addf %44, %47 : vector<8x256xf32>
    %c0_33 = arith.constant 0 : index
    %c0_34 = arith.constant 0 : index
    %c0_35 = arith.constant 0 : index
    %49 = vector.load %arg11[%c0_33, %c0_34, %c0_35] : memref<2x8x256xf32, #tpu.memory_space<vmem>>, vector<1x8x256xf32>
    %50 = vector.shape_cast %49 : vector<1x8x256xf32> to vector<8x256xf32>
    %51 = vector.shape_cast %48 : vector<8x256xf32> to vector<1x8x256xf32>
    tpu.vector_store %arg11[%c0_33, %c0_34, %c0_35], %51 {strides = array<i32>} : memref<2x8x256xf32, #tpu.memory_space<vmem>>, vector<1x8x256xf32>,
    %c1 = arith.constant 1 : index
    %c0_36 = arith.constant 0 : index
    %c0_37 = arith.constant 0 : index
    %52 = vector.load %arg1[%c1, %c0_36, %c0_37] : memref<2x40x256xf32, #tpu.memory_space<vmem>>, vector<1x40x256xf32>
    %53 = vector.shape_cast %52 : vector<1x40x256xf32> to vector<40x256xf32>
    %cst_38 = arith.constant dense<0.000000e+00> : vector<8x256xf32>
    %54 = tpu.matmul %7, %53, %cst_38 {dimension_numbers = #tpu.dot_dimension_numbers<[1], [0], [0], [1], [0, 0, 1, 1], [], []>} : vector<8x40xf32>, vector<40x256xf32>, vector<8x256xf32> -> vector<8x256xf32>
    %55 = vector.broadcast %8 : vector<8x1xf32> to vector<8x256xf32>
    %56 = arith.addf %54, %55 : vector<8x256xf32>
    %cst_39 = arith.constant dense<0.000000e+00> : vector<256xf32>
    %57 = vector.multi_reduction <add>, %56, %cst_39 [0] : vector<8x256xf32> to vector<256xf32>
    %58 = vector.shape_cast %57 : vector<256xf32> to vector<1x256xf32>
    %59 = arith.mulf %56, %56 : vector<8x256xf32>
    %cst_40 = arith.constant dense<0.000000e+00> : vector<256xf32>
    %60 = vector.multi_reduction <add>, %59, %cst_40 [0] : vector<8x256xf32> to vector<256xf32>
    %61 = vector.shape_cast %60 : vector<256xf32> to vector<1x256xf32>
    %cst_41 = arith.constant dense<0.000000e+00> : vector<1x16xf32>
    %62 = tpu.matmul %58, %9, %cst_41 {dimension_numbers = #tpu.dot_dimension_numbers<[1], [0], [0], [1], [0, 0, 1, 1], [], []>} : vector<1x256xf32>, vector<256x16xf32>, vector<1x16xf32> -> vector<1x16xf32>
    %cst_42 = arith.constant dense<0.000000e+00> : vector<1x16xf32>
    %63 = tpu.matmul %61, %9, %cst_42 {dimension_numbers = #tpu.dot_dimension_numbers<[1], [0], [0], [1], [0, 0, 1, 1], [], []>} : vector<1x256xf32>, vector<256x16xf32>, vector<1x16xf32> -> vector<1x16xf32>
    %64 = arith.mulf %62, %11 : vector<1x16xf32>
    %cst_43 = arith.constant 2.000000e+00 : f32
    %65 = vector.broadcast %cst_43 : f32 to vector<1x16xf32>
    %66 = arith.mulf %65, %64 : vector<1x16xf32>
    %67 = arith.mulf %66, %62 : vector<1x16xf32>
    %68 = arith.subf %63, %67 : vector<1x16xf32>
    %69 = arith.mulf %68, %11 : vector<1x16xf32>
    %70 = arith.mulf %64, %64 : vector<1x16xf32>
    %71 = arith.addf %69, %70 : vector<1x16xf32>
    %cst_44 = arith.constant 9.99999974E-6 : f32
    %72 = vector.broadcast %cst_44 : f32 to vector<1x16xf32>
    %73 = arith.addf %71, %72 : vector<1x16xf32>
    %74 = math.rsqrt %73 : vector<1x16xf32>
    %cst_45 = arith.constant dense<0.000000e+00> : vector<1x256xf32>
    %75 = tpu.matmul %64, %10, %cst_45 {dimension_numbers = #tpu.dot_dimension_numbers<[1], [0], [0], [1], [0, 0, 1, 1], [], []>} : vector<1x16xf32>, vector<16x256xf32>, vector<1x256xf32> -> vector<1x256xf32>
    %cst_46 = arith.constant dense<0.000000e+00> : vector<1x256xf32>
    %76 = tpu.matmul %74, %10, %cst_46 {dimension_numbers = #tpu.dot_dimension_numbers<[1], [0], [0], [1], [0, 0, 1, 1], [], []>} : vector<1x16xf32>, vector<16x256xf32>, vector<1x256xf32> -> vector<1x256xf32>
    %77 = vector.broadcast %75 : vector<1x256xf32> to vector<8x256xf32>
    %78 = arith.subf %56, %77 : vector<8x256xf32>
    %79 = vector.broadcast %76 : vector<1x256xf32> to vector<8x256xf32>
    %80 = arith.mulf %78, %79 : vector<8x256xf32>
    %81 = arith.mulf %80, %2 : vector<8x256xf32>
    %82 = arith.addf %81, %4 : vector<8x256xf32>
    %cst_47 = arith.constant 0.000000e+00 : f32
    %83 = vector.broadcast %cst_47 : f32 to vector<8x256xf32>
    %84 = arith.maximumf %82, %83 : vector<8x256xf32>
    %cst_48 = arith.constant 0.000000e+00 : f32
    %85 = vector.broadcast %cst_48 : f32 to vector<8x256xf32>
    %86 = arith.minimumf %82, %85 : vector<8x256xf32>
    %87 = arith.mulf %6, %86 : vector<8x256xf32>
    %88 = arith.addf %84, %87 : vector<8x256xf32>
    %c1_49 = arith.constant 1 : index
    %c0_50 = arith.constant 0 : index
    %c0_51 = arith.constant 0 : index
    %89 = vector.load %arg11[%c1_49, %c0_50, %c0_51] : memref<2x8x256xf32, #tpu.memory_space<vmem>>, vector<1x8x256xf32>
    %90 = vector.shape_cast %89 : vector<1x8x256xf32> to vector<8x256xf32>
    %91 = vector.shape_cast %88 : vector<8x256xf32> to vector<1x8x256xf32>
    tpu.vector_store %arg11[%c1_49, %c0_50, %c0_51], %91 {strides = array<i32>} : memref<2x8x256xf32, #tpu.memory_space<vmem>>, vector<1x8x256xf32>,
    return
  }
  func.func @transform_0(%arg0: i32) -> (i32, i32, i32) {
    %c0_i32 = arith.constant 0 : i32
    %c0_i32_0 = arith.constant 0 : i32
    %c0_i32_1 = arith.constant 0 : i32
    return %arg0, %c0_i32, %c0_i32_0 : i32, i32, i32
  }
  func.func @transform_1(%arg0: i32) -> (i32, i32) {
    %c0_i32 = arith.constant 0 : i32
    %c0_i32_0 = arith.constant 0 : i32
    %c0_i32_1 = arith.constant 0 : i32
    return %c0_i32, %c0_i32_0 : i32, i32
  }
  func.func @transform_2(%arg0: i32) -> (i32, i32) {
    %c0_i32 = arith.constant 0 : i32
    %c0_i32_0 = arith.constant 0 : i32
    %c0_i32_1 = arith.constant 0 : i32
    return %c0_i32, %c0_i32_0 : i32, i32
  }
  func.func @transform_3(%arg0: i32) -> (i32, i32) {
    %c0_i32 = arith.constant 0 : i32
    %c0_i32_0 = arith.constant 0 : i32
    %c0_i32_1 = arith.constant 0 : i32
    return %c0_i32, %c0_i32_0 : i32, i32
  }
  func.func @transform_4(%arg0: i32) -> (i32, i32) {
    %c0_i32 = arith.constant 0 : i32
    %c0_i32_0 = arith.constant 0 : i32
    %c0_i32_1 = arith.constant 0 : i32
    return %c0_i32, %c0_i32_0 : i32, i32
  }
  func.func @transform_5(%arg0: i32) -> (i32, i32) {
    %c0_i32 = arith.constant 0 : i32
    %c0_i32_0 = arith.constant 0 : i32
    %c0_i32_1 = arith.constant 0 : i32
    return %c0_i32, %c0_i32_0 : i32, i32
  }
  func.func @transform_6(%arg0: i32) -> (i32, i32) {
    %c0_i32 = arith.constant 0 : i32
    %c0_i32_0 = arith.constant 0 : i32
    %c0_i32_1 = arith.constant 0 : i32
    return %c0_i32, %c0_i32_0 : i32, i32
  }
  func.func @transform_7(%arg0: i32) -> (i32, i32) {
    %c0_i32 = arith.constant 0 : i32
    %c0_i32_0 = arith.constant 0 : i32
    %c0_i32_1 = arith.constant 0 : i32
    return %c0_i32, %c0_i32_0 : i32, i32
  }
  func.func @transform_8(%arg0: i32) -> (i32, i32) {
    %c0_i32 = arith.constant 0 : i32
    %c0_i32_0 = arith.constant 0 : i32
    %c0_i32_1 = arith.constant 0 : i32
    return %c0_i32, %c0_i32_0 : i32, i32
  }
  func.func @transform_9(%arg0: i32) -> (i32, i32) {
    %c0_i32 = arith.constant 0 : i32
    %c0_i32_0 = arith.constant 0 : i32
    %c0_i32_1 = arith.constant 0 : i32
    return %c0_i32, %c0_i32_0 : i32, i32
  }
  func.func @transform_10(%arg0: i32) -> (i32, i32, i32) {
    %c0_i32 = arith.constant 0 : i32
    %c0_i32_0 = arith.constant 0 : i32
    %c0_i32_1 = arith.constant 0 : i32
    return %arg0, %c0_i32, %c0_i32_0 : i32, i32, i32
  }
}

</mosaic_0001>

<llo_original>
// kernel: tpu_custom_call.1
$region0: #{tpu_custom_call.1}
  #allocation0 [shape = 'u32[]', space=smem, size = 0x4, offset = 0x4, fixed_abs, tag = 'smem constant byte address 0x4 - core index']
  #allocation1 [shape = 'u32[144,128]{1,0:T(1,128)}', space=vmem, size = 0x12000, scoped, tag = 'internal scratch']
  %s0 = inlined_call_operand.vmem [shape: f32[2,40,256], index: 0, kind: input, shape index: {}]
  %s1 = inlined_call_operand.vmem [shape: f32[8,40], index: 1, kind: input, shape index: {}]
  %s2 = inlined_call_operand.vmem [shape: f32[8,1], index: 2, kind: input, shape index: {}]
  %s3 = inlined_call_operand.vmem [shape: f32[8,14], index: 3, kind: input, shape index: {}]
  %s4 = inlined_call_operand.vmem [shape: f32[8,14], index: 4, kind: input, shape index: {}]
  %s5 = inlined_call_operand.vmem [shape: f32[8,14], index: 5, kind: input, shape index: {}]
  %s6 = inlined_call_operand.vmem [shape: f32[256,16], index: 6, kind: input, shape index: {}]
  %s7 = inlined_call_operand.vmem [shape: f32[16,256], index: 7, kind: input, shape index: {}]
  %s8 = inlined_call_operand.vmem [shape: f32[14,256], index: 8, kind: input, shape index: {}]
  %s9 = inlined_call_operand.vmem [shape: f32[1,16], index: 9, kind: input, shape index: {}]
  %s10 = inlined_call_operand.hbm [shape: f32[2,8,256], index: 10, kind: output, shape index: {}]
  %s11 = sld [smem:[#allocation0]]
  $region50: #{tpu_custom_call.1} parent=0
    _
  %s13 = ssub.s32 1, %s11
  %s14 = scalar_select 0, %s13, %s11
  $region1: #{tpu_custom_call.1} parent=0
    #allocation2 [shape = 'u8[16384]{0}', space=vmem, size = 0x4000, scoped, tag = 'output window, operand 0, single buffered']
    #allocation3 [shape = 's32[1]{0}', space=sflag, size = 0x4, scoped, tag = 'scoped memory for tpu_custom_call.1']
    %15 = vsyncpa [#allocation3], 0
    // Predicated region
    $region2: #{tpu_custom_call.1} parent=1 // pred_check
      _
    $region3: #{tpu_custom_call.1} parent=1 // pred_check_branch
      %17 = sbr.rel (0) target = $region5
    $region4: #{tpu_custom_call.1} parent=1 // pred_region
      _
    $region5: #{tpu_custom_call.1} parent=1 // pred_fallthru
      _
    // Predicated region
    $region6: #{tpu_custom_call.1} parent=1 // pred_check
      _
    $region7: #{tpu_custom_call.1} parent=1 // pred_check_branch
      %19 = sbr.rel (0) target = $region9
    $region8: #{tpu_custom_call.1} parent=1 // pred_region
      _
    $region9: #{tpu_custom_call.1} parent=1 // pred_fallthru
      _
    // Predicated region
    $region10: #{tpu_custom_call.1} parent=1 // pred_check
      _
    $region11: #{tpu_custom_call.1} parent=1 // pred_check_branch
      %21 = sbr.rel (0) target = $region13
    $region12: #{tpu_custom_call.1} parent=1 // pred_region
      _
    $region13: #{tpu_custom_call.1} parent=1 // pred_fallthru
      _
    // Predicated region
    $region14: #{tpu_custom_call.1} parent=1 // pred_check
      _
    $region15: #{tpu_custom_call.1} parent=1 // pred_check_branch
      %23 = sbr.rel (0) target = $region17
    $region16: #{tpu_custom_call.1} parent=1 // pred_region
      _
    $region17: #{tpu_custom_call.1} parent=1 // pred_fallthru
      _
    // Predicated region
    $region18: #{tpu_custom_call.1} parent=1 // pred_check
      _
    $region19: #{tpu_custom_call.1} parent=1 // pred_check_branch
      %25 = sbr.rel (0) target = $region21
    $region20: #{tpu_custom_call.1} parent=1 // pred_region
      _
    $region21: #{tpu_custom_call.1} parent=1 // pred_fallthru
      _
    // Predicated region
    $region22: #{tpu_custom_call.1} parent=1 // pred_check
      _
    $region23: #{tpu_custom_call.1} parent=1 // pred_check_branch
      %27 = sbr.rel (0) target = $region25
    $region24: #{tpu_custom_call.1} parent=1 // pred_region
      _
    $region25: #{tpu_custom_call.1} parent=1 // pred_fallthru
      _
    // Predicated region
    $region26: #{tpu_custom_call.1} parent=1 // pred_check
      _
    $region27: #{tpu_custom_call.1} parent=1 // pred_check_branch
      %29 = sbr.rel (0) target = $region29
    $region28: #{tpu_custom_call.1} parent=1 // pred_region
      _
    $region29: #{tpu_custom_call.1} parent=1 // pred_fallthru
      _
    // Predicated region
    $region30: #{tpu_custom_call.1} parent=1 // pred_check
      _
    $region31: #{tpu_custom_call.1} parent=1 // pred_check_branch
      %31 = sbr.rel (0) target = $region33
    $region32: #{tpu_custom_call.1} parent=1 // pred_region
      _
    $region33: #{tpu_custom_call.1} parent=1 // pred_fallthru
      _
    // Predicated region
    $region34: #{tpu_custom_call.1} parent=1 // pred_check
      _
    $region35: #{tpu_custom_call.1} parent=1 // pred_check_branch
      %33 = sbr.rel (0) target = $region37
    $region36: #{tpu_custom_call.1} parent=1 // pred_region
      _
    $region37: #{tpu_custom_call.1} parent=1 // pred_fallthru
      _
    // Predicated region
    $region38: #{tpu_custom_call.1} parent=1 // pred_check
      _
    $region39: #{tpu_custom_call.1} parent=1 // pred_check_branch
      %35 = sbr.rel (0) target = $region41
    $region40: #{tpu_custom_call.1} parent=1 // pred_region
      _
    $region41: #{tpu_custom_call.1} parent=1 // pred_fallthru
      _
    %v36 = vld [vmem:[%s8] sm:$0xff]
    %v37 = vld [vmem:[%s8 + $0x8] sm:$0xff]
    %v38 = vld [vmem:[%s8 + $0x10] sm:$0x3f]
    %v39 = vld [vmem:[%s8 + $0x18] sm:$0x3f]
    %v40 = vld [vmem:[%s3] sm:$0xff]
    %vm41 = vcmask 113664
    %v43 = vsel %vm41, %v40, 0
    %vm45 = vcmask 1045504
    %v47 = vsel %vm45, %v38, 0
    %v50 = vsel %vm45, %v39, 0
    %52 = vmatprep.subr.mxu0 0.0
    %53 = vmatpush1.msra.mxu0 0.0
    %54 = vmatprep.subr.mxu0 0.0
    %55 = vmatpush1.msra.mxu0 0.0
    %56 = vmatprep.subr.mxu0 0.0
    %57 = vmatpush1.msra.mxu0 0.0
    %58 = vmatprep.subr.mxu0 0.0
    %59 = vmatpush1.msra.mxu0 0.0
    %60 = vmatprep.subr.mxu0 0.0
    %61 = vmatpush1.msra.mxu0 0.0
    %62 = vmatprep.subr.mxu0 0.0
    %63 = vmatpush1.msra.mxu0 0.0
    %64 = vmatprep.subr.mxu0 0.0
    %65 = vmatpush1.msra.mxu0 0.0
    %66 = vmatprep.subr.mxu0 0.0
    %67 = vmatpush1.msra.mxu0 0.0
    %68 = vmatprep.subr.mxu0 0.0
    %69 = vmatpush1.msra.mxu0 0.0
    %70 = vmatprep.subr.mxu0 0.0
    %71 = vmatpush1.msra.mxu0 0.0
    %72 = vmatprep.subr.mxu0 0.0
    %73 = vmatpush1.msra.mxu0 0.0
    %74 = vmatprep.subr.mxu0 0.0
    %75 = vmatpush1.msra.mxu0 0.0
    %76 = vmatprep.subr.mxu0 0.0
    %77 = vmatpush1.msra.mxu0 0.0
    %78 = vmatprep.subr.mxu0 0.0
    %79 = vmatpush1.msra.mxu0 0.0
    %80 = vmatprep.subr.mxu0 %v50
    %81 = vmatpush1.msra.mxu0 %v47
    %82 = vmatprep.subr.mxu0 %v37
    %83 = vmatpush1.msra.mxu0 %v36
    %84 = vmatprep.subr.mxu0 0.0
    %85 = vmatpush2.msra.mxu0 0.0
    %86 = vmatprep.subr.mxu0 0.0
    %87 = vmatpush2.msra.mxu0 0.0
    %88 = vmatprep.subr.mxu0 0.0
    %89 = vmatpush2.msra.mxu0 0.0
    %90 = vmatprep.subr.mxu0 0.0
    %91 = vmatpush2.msra.mxu0 0.0
    %92 = vmatprep.subr.mxu0 0.0
    %93 = vmatpush2.msra.mxu0 0.0
    %94 = vmatprep.subr.mxu0 0.0
    %95 = vmatpush2.msra.mxu0 0.0
    %96 = vmatprep.subr.mxu0 0.0
    %97 = vmatpush2.msra.mxu0 0.0
    %98 = vmatprep.subr.mxu0 0.0
    %99 = vmatpush2.msra.mxu0 0.0
    %100 = vmatprep.subr.mxu0 0.0
    %101 = vmatpush2.msra.mxu0 0.0
    %102 = vmatprep.subr.mxu0 0.0
    %103 = vmatpush2.msra.mxu0 0.0
    %104 = vmatprep.subr.mxu0 0.0
    %105 = vmatpush2.msra.mxu0 0.0
    %106 = vmatprep.subr.mxu0 0.0
    %107 = vmatpush2.msra.mxu0 0.0
    %108 = vmatprep.subr.mxu0 0.0
    %109 = vmatpush2.msra.mxu0 0.0
    %110 = vmatprep.subr.mxu0 0.0
    %111 = vmatpush2.msra.mxu0 0.0
    %112 = vmatprep.subr.mxu0 0.0
    %113 = vmatpush2.msra.mxu0 0.0
    %114 = vmatprep.subr.mxu0 0.0
    %115 = vmatpush2.msra.mxu0 0.0
    %116 = vmatprep.mubr.f32.mxu0 0.0
    %117 = vmatmul.mubr.f32.gmra.mxu0 %v43
    %v118 = vpop.f32.mrf.mxu0
    %v119 = vadd.f32 0.0, %v118
    %v120 = vpop.f32.mrf.mxu0
    %v121 = vadd.f32 0.0, %v120
    %122 = vdwg.mxu0
    %v123 = vld [vmem:[%s4] sm:$0xff]
    %v125 = vsel %vm41, %v123, 0
    %127 = vmatprep.subr.mxu0 0.0
    %128 = vmatpush1.msra.mxu0 0.0
    %129 = vmatprep.subr.mxu0 0.0
    %130 = vmatpush1.msra.mxu0 0.0
    %131 = vmatprep.subr.mxu0 0.0
    %132 = vmatpush1.msra.mxu0 0.0
    %133 = vmatprep.subr.mxu0 0.0
    %134 = vmatpush1.msra.mxu0 0.0
    %135 = vmatprep.subr.mxu0 0.0
    %136 = vmatpush1.msra.mxu0 0.0
    %137 = vmatprep.subr.mxu0 0.0
    %138 = vmatpush1.msra.mxu0 0.0
    %139 = vmatprep.subr.mxu0 0.0
    %140 = vmatpush1.msra.mxu0 0.0
    %141 = vmatprep.subr.mxu0 0.0
    %142 = vmatpush1.msra.mxu0 0.0
    %143 = vmatprep.subr.mxu0 0.0
    %144 = vmatpush1.msra.mxu0 0.0
    %145 = vmatprep.subr.mxu0 0.0
    %146 = vmatpush1.msra.mxu0 0.0
    %147 = vmatprep.subr.mxu0 0.0
    %148 = vmatpush1.msra.mxu0 0.0
    %149 = vmatprep.subr.mxu0 0.0
    %150 = vmatpush1.msra.mxu0 0.0
    %151 = vmatprep.subr.mxu0 0.0
    %152 = vmatpush1.msra.mxu0 0.0
    %153 = vmatprep.subr.mxu0 0.0
    %154 = vmatpush1.msra.mxu0 0.0
    %155 = vmatprep.subr.mxu0 %v50
    %156 = vmatpush1.msra.mxu0 %v47
    %157 = vmatprep.subr.mxu0 %v37
    %158 = vmatpush1.msra.mxu0 %v36
    %159 = vmatprep.subr.mxu0 0.0
    %160 = vmatpush2.msra.mxu0 0.0
    %161 = vmatprep.subr.mxu0 0.0
    %162 = vmatpush2.msra.mxu0 0.0
    %163 = vmatprep.subr.mxu0 0.0
    %164 = vmatpush2.msra.mxu0 0.0
    %165 = vmatprep.subr.mxu0 0.0
    %166 = vmatpush2.msra.mxu0 0.0
    %167 = vmatprep.subr.mxu0 0.0
    %168 = vmatpush2.msra.mxu0 0.0
    %169 = vmatprep.subr.mxu0 0.0
    %170 = vmatpush2.msra.mxu0 0.0
    %171 = vmatprep.subr.mxu0 0.0
    %172 = vmatpush2.msra.mxu0 0.0
    %173 = vmatprep.subr.mxu0 0.0
    %174 = vmatpush2.msra.mxu0 0.0
    %175 = vmatprep.subr.mxu0 0.0
    %176 = vmatpush2.msra.mxu0 0.0
    %177 = vmatprep.subr.mxu0 0.0
    %178 = vmatpush2.msra.mxu0 0.0
    %179 = vmatprep.subr.mxu0 0.0
    %180 = vmatpush2.msra.mxu0 0.0
    %181 = vmatprep.subr.mxu0 0.0
    %182 = vmatpush2.msra.mxu0 0.0
    %183 = vmatprep.subr.mxu0 0.0
    %184 = vmatpush2.msra.mxu0 0.0
    %185 = vmatprep.subr.mxu0 0.0
    %186 = vmatpush2.msra.mxu0 0.0
    %187 = vmatprep.subr.mxu0 0.0
    %188 = vmatpush2.msra.mxu0 0.0
    %189 = vmatprep.subr.mxu0 0.0
    %190 = vmatpush2.msra.mxu0 0.0
    %191 = vmatprep.mubr.f32.mxu0 0.0
    %192 = vmatmul.mubr.f32.gmra.mxu0 %v125
    %v193 = vpop.f32.mrf.mxu0
    %v194 = vadd.f32 0.0, %v193
    %v195 = vpop.f32.mrf.mxu0
    %v196 = vadd.f32 0.0, %v195
    %197 = vdwg.mxu0
    %v198 = vld [vmem:[%s5] sm:$0xff]
    %v200 = vsel %vm41, %v198, 0
    %202 = vmatprep.subr.mxu0 0.0
    %203 = vmatpush1.msra.mxu0 0.0
    %204 = vmatprep.subr.mxu0 0.0
    %205 = vmatpush1.msra.mxu0 0.0
    %206 = vmatprep.subr.mxu0 0.0
    %207 = vmatpush1.msra.mxu0 0.0
    %208 = vmatprep.subr.mxu0 0.0
    %209 = vmatpush1.msra.mxu0 0.0
    %210 = vmatprep.subr.mxu0 0.0
    %211 = vmatpush1.msra.mxu0 0.0
    %212 = vmatprep.subr.mxu0 0.0
    %213 = vmatpush1.msra.mxu0 0.0
    %214 = vmatprep.subr.mxu0 0.0
    %215 = vmatpush1.msra.mxu0 0.0
    %216 = vmatprep.subr.mxu0 0.0
    %217 = vmatpush1.msra.mxu0 0.0
    %218 = vmatprep.subr.mxu0 0.0
    %219 = vmatpush1.msra.mxu0 0.0
    %220 = vmatprep.subr.mxu0 0.0
    %221 = vmatpush1.msra.mxu0 0.0
    %222 = vmatprep.subr.mxu0 0.0
    %223 = vmatpush1.msra.mxu0 0.0
    %224 = vmatprep.subr.mxu0 0.0
    %225 = vmatpush1.msra.mxu0 0.0
    %226 = vmatprep.subr.mxu0 0.0
    %227 = vmatpush1.msra.mxu0 0.0
    %228 = vmatprep.subr.mxu0 0.0
    %229 = vmatpush1.msra.mxu0 0.0
    %230 = vmatprep.subr.mxu0 %v50
    %231 = vmatpush1.msra.mxu0 %v47
    %232 = vmatprep.subr.mxu0 %v37
    %233 = vmatpush1.msra.mxu0 %v36
    %234 = vmatprep.subr.mxu0 0.0
    %235 = vmatpush2.msra.mxu0 0.0
    %236 = vmatprep.subr.mxu0 0.0
    %237 = vmatpush2.msra.mxu0 0.0
    %238 = vmatprep.subr.mxu0 0.0
    %239 = vmatpush2.msra.mxu0 0.0
    %240 = vmatprep.subr.mxu0 0.0
    %241 = vmatpush2.msra.mxu0 0.0
    %242 = vmatprep.subr.mxu0 0.0
    %243 = vmatpush2.msra.mxu0 0.0
    %244 = vmatprep.subr.mxu0 0.0
    %245 = vmatpush2.msra.mxu0 0.0
    %246 = vmatprep.subr.mxu0 0.0
    %247 = vmatpush2.msra.mxu0 0.0
    %248 = vmatprep.subr.mxu0 0.0
    %249 = vmatpush2.msra.mxu0 0.0
    %250 = vmatprep.subr.mxu0 0.0
    %251 = vmatpush2.msra.mxu0 0.0
    %252 = vmatprep.subr.mxu0 0.0
    %253 = vmatpush2.msra.mxu0 0.0
    %254 = vmatprep.subr.mxu0 0.0
    %255 = vmatpush2.msra.mxu0 0.0
    %256 = vmatprep.subr.mxu0 0.0
    %257 = vmatpush2.msra.mxu0 0.0
    %258 = vmatprep.subr.mxu0 0.0
    %259 = vmatpush2.msra.mxu0 0.0
    %260 = vmatprep.subr.mxu0 0.0
    %261 = vmatpush2.msra.mxu0 0.0
    %262 = vmatprep.subr.mxu0 0.0
    %263 = vmatpush2.msra.mxu0 0.0
    %264 = vmatprep.subr.mxu0 0.0
    %265 = vmatpush2.msra.mxu0 0.0
    %266 = vmatprep.mubr.f32.mxu0 0.0
    %267 = vmatmul.mubr.f32.gmra.mxu0 %v200
    %v268 = vpop.f32.mrf.mxu0
    %v269 = vadd.f32 0.0, %v268
    %v270 = vpop.f32.mrf.mxu0
    %v271 = vadd.f32 0.0, %v270
    %272 = vdwg.mxu0
    %v273 = vld [vmem:[%s1] sm:$0xff]
    %v274 = vld [vmem:[%s2] sm:$0xff]
    %v275 = vld [vmem:[%s6] sm:$0xff]
    %v276 = vld [vmem:[%s6 + $0x8] sm:$0xff]
    %v277 = vld [vmem:[%s6 + $0x10] sm:$0xff]
    %v278 = vld [vmem:[%s6 + $0x18] sm:$0xff]
    %v279 = vld [vmem:[%s6 + $0x20] sm:$0xff]
    %v280 = vld [vmem:[%s6 + $0x28] sm:$0xff]
    %v281 = vld [vmem:[%s6 + $0x30] sm:$0xff]
    %v282 = vld [vmem:[%s6 + $0x38] sm:$0xff]
    %v283 = vld [vmem:[%s6 + $0x40] sm:$0xff]
    %v284 = vld [vmem:[%s6 + $0x48] sm:$0xff]
    %v285 = vld [vmem:[%s6 + $0x50] sm:$0xff]
    %v286 = vld [vmem:[%s6 + $0x58] sm:$0xff]
    %v287 = vld [vmem:[%s6 + $0x60] sm:$0xff]
    %v288 = vld [vmem:[%s6 + $0x68] sm:$0xff]
    %v289 = vld [vmem:[%s6 + $0x70] sm:$0xff]
    %v290 = vld [vmem:[%s6 + $0x78] sm:$0xff]
    %v291 = vld [vmem:[%s6 + $0x80] sm:$0xff]
    %v292 = vld [vmem:[%s6 + $0x88] sm:$0xff]
    %v293 = vld [vmem:[%s6 + $0x90] sm:$0xff]
    %v294 = vld [vmem:[%s6 + $0x98] sm:$0xff]
    %v295 = vld [vmem:[%s6 + $0xa0] sm:$0xff]
    %v296 = vld [vmem:[%s6 + $0xa8] sm:$0xff]
    %v297 = vld [vmem:[%s6 + $0xb0] sm:$0xff]
    %v298 = vld [vmem:[%s6 + $0xb8] sm:$0xff]
    %v299 = vld [vmem:[%s6 + $0xc0] sm:$0xff]
    %v300 = vld [vmem:[%s6 + $0xc8] sm:$0xff]
    %v301 = vld [vmem:[%s6 + $0xd0] sm:$0xff]
    %v302 = vld [vmem:[%s6 + $0xd8] sm:$0xff]
    %v303 = vld [vmem:[%s6 + $0xe0] sm:$0xff]
    %v304 = vld [vmem:[%s6 + $0xe8] sm:$0xff]
    %v305 = vld [vmem:[%s6 + $0xf0] sm:$0xff]
    %v306 = vld [vmem:[%s6 + $0xf8] sm:$0xff]
    %v307 = vld [vmem:[%s7] sm:$0xff]
    %v308 = vld [vmem:[%s7 + $0x8] sm:$0xff]
    %v309 = vld [vmem:[%s7 + $0x10] sm:$0xff]
    %v310 = vld [vmem:[%s7 + $0x18] sm:$0xff]
    %v311 = vld [vmem:[%s9] sm:$0x1]
    %v312 = vld [vmem:[%s0] sm:$0xff]
    %v313 = vld [vmem:[%s0 + $0x8] sm:$0xff]
    %v314 = vld [vmem:[%s0 + $0x10] sm:$0xff]
    %v315 = vld [vmem:[%s0 + $0x18] sm:$0xff]
    %v316 = vld [vmem:[%s0 + $0x20] sm:$0xff]
    %v317 = vld [vmem:[%s0 + $0x28] sm:$0xff]
    %v318 = vld [vmem:[%s0 + $0x30] sm:$0xff]
    %v319 = vld [vmem:[%s0 + $0x38] sm:$0xff]
    %v320 = vld [vmem:[%s0 + $0x40] sm:$0xff]
    %v321 = vld [vmem:[%s0 + $0x48] sm:$0xff]
    %323 = vset.pattern.permute.xlu0 0
    %324 = vperm.xlu0 %323, %v274
    %v325 = vpop.permute.xlu0 %324
    %vm327 = vcmask 326656
    %v329 = vsel %vm327, %v273, 0
    %331 = vmatprep.subr.mxu0 0.0
    %332 = vmatpush1.msra.mxu0 0.0
    %333 = vmatprep.subr.mxu0 0.0
    %334 = vmatpush1.msra.mxu0 0.0
    %335 = vmatprep.subr.mxu0 0.0
    %336 = vmatpush1.msra.mxu0 0.0
    %337 = vmatprep.subr.mxu0 0.0
    %338 = vmatpush1.msra.mxu0 0.0
    %339 = vmatprep.subr.mxu0 0.0
    %340 = vmatpush1.msra.mxu0 0.0
    %341 = vmatprep.subr.mxu0 0.0
    %342 = vmatpush1.msra.mxu0 0.0
    %343 = vmatprep.subr.mxu0 0.0
    %344 = vmatpush1.msra.mxu0 0.0
    %345 = vmatprep.subr.mxu0 0.0
    %346 = vmatpush1.msra.mxu0 0.0
    %347 = vmatprep.subr.mxu0 0.0
    %348 = vmatpush1.msra.mxu0 0.0
    %349 = vmatprep.subr.mxu0 0.0
    %350 = vmatpush1.msra.mxu0 0.0
    %351 = vmatprep.subr.mxu0 0.0
    %352 = vmatpush1.msra.mxu0 0.0
    %353 = vmatprep.subr.mxu0 %v321
    %354 = vmatpush1.msra.mxu0 %v320
    %355 = vmatprep.subr.mxu0 %v319
    %356 = vmatpush1.msra.mxu0 %v318
    %357 = vmatprep.subr.mxu0 %v317
    %358 = vmatpush1.msra.mxu0 %v316
    %359 = vmatprep.subr.mxu0 %v315
    %360 = vmatpush1.msra.mxu0 %v314
    %361 = vmatprep.subr.mxu0 %v313
    %362 = vmatpush1.msra.mxu0 %v312
    %363 = vmatprep.subr.mxu0 0.0
    %364 = vmatpush2.msra.mxu0 0.0
    %365 = vmatprep.subr.mxu0 0.0
    %366 = vmatpush2.msra.mxu0 0.0
    %367 = vmatprep.subr.mxu0 0.0
    %368 = vmatpush2.msra.mxu0 0.0
    %369 = vmatprep.subr.mxu0 0.0
    %370 = vmatpush2.msra.mxu0 0.0
    %371 = vmatprep.subr.mxu0 0.0
    %372 = vmatpush2.msra.mxu0 0.0
    %373 = vmatprep.subr.mxu0 0.0
    %374 = vmatpush2.msra.mxu0 0.0
    %375 = vmatprep.subr.mxu0 0.0
    %376 = vmatpush2.msra.mxu0 0.0
    %377 = vmatprep.subr.mxu0 0.0
    %378 = vmatpush2.msra.mxu0 0.0
    %379 = vmatprep.subr.mxu0 0.0
    %380 = vmatpush2.msra.mxu0 0.0
    %381 = vmatprep.subr.mxu0 0.0
    %382 = vmatpush2.msra.mxu0 0.0
    %383 = vmatprep.subr.mxu0 0.0
    %384 = vmatpush2.msra.mxu0 0.0
    %385 = vmatprep.subr.mxu0 0.0
    %386 = vmatpush2.msra.mxu0 0.0
    %387 = vmatprep.subr.mxu0 0.0
    %388 = vmatpush2.msra.mxu0 0.0
    %389 = vmatprep.subr.mxu0 0.0
    %390 = vmatpush2.msra.mxu0 0.0
    %391 = vmatprep.subr.mxu0 0.0
    %392 = vmatpush2.msra.mxu0 0.0
    %393 = vmatprep.subr.mxu0 0.0
    %394 = vmatpush2.msra.mxu0 0.0
    %395 = vmatprep.mubr.f32.mxu0 0.0
    %396 = vmatmul.mubr.f32.gmra.mxu0 %v329
    %v397 = vpop.f32.mrf.mxu0
    %v398 = vadd.f32 %v325, %v397
    %v399 = vpop.f32.mrf.mxu0
    %v400 = vadd.f32 %v325, %v399
    %401 = vdwg.mxu0
    %v402 = vrot.slane %v398, 4
    %v403 = vadd.f32 %v398, %v402
    %v404 = vrot.slane %v403, 2
    %v405 = vadd.f32 %v403, %v404
    %v406 = vrot.slane %v405, 1
    %v407 = vadd.f32 %v405, %v406
    %v408 = vrot.slane %v400, 4
    %v409 = vadd.f32 %v400, %v408
    %v410 = vrot.slane %v409, 2
    %v411 = vadd.f32 %v409, %v410
    %v412 = vrot.slane %v411, 1
    %v413 = vadd.f32 %v411, %v412
    %v414 = vmul.f32 %v398, %v398
    %v415 = vmul.f32 %v400, %v400
    %v416 = vrot.slane %v414, 4
    %v417 = vadd.f32 %v414, %v416
    %v418 = vrot.slane %v417, 2
    %v419 = vadd.f32 %v417, %v418
    %v420 = vrot.slane %v419, 1
    %v421 = vadd.f32 %v419, %v420
    %v422 = vrot.slane %v415, 4
    %v423 = vadd.f32 %v415, %v422
    %v424 = vrot.slane %v423, 2
    %v425 = vadd.f32 %v423, %v424
    %v426 = vrot.slane %v425, 1
    %v427 = vadd.f32 %v425, %v426
    %428 = vmatprep.subr.mxu0 0.0
    %429 = vmatpush1.msra.mxu0 %v290
    %430 = vmatprep.subr.mxu0 0.0
    %431 = vmatpush1.msra.mxu0 %v289
    %432 = vmatprep.subr.mxu0 0.0
    %433 = vmatpush1.msra.mxu0 %v288
    %434 = vmatprep.subr.mxu0 0.0
    %435 = vmatpush1.msra.mxu0 %v287
    %436 = vmatprep.subr.mxu0 0.0
    %437 = vmatpush1.msra.mxu0 %v286
    %438 = vmatprep.subr.mxu0 0.0
    %439 = vmatpush1.msra.mxu0 %v285
    %440 = vmatprep.subr.mxu0 0.0
    %441 = vmatpush1.msra.mxu0 %v284
    %442 = vmatprep.subr.mxu0 0.0
    %443 = vmatpush1.msra.mxu0 %v283
    %444 = vmatprep.subr.mxu0 0.0
    %445 = vmatpush1.msra.mxu0 %v282
    %446 = vmatprep.subr.mxu0 0.0
    %447 = vmatpush1.msra.mxu0 %v281
    %448 = vmatprep.subr.mxu0 0.0
    %449 = vmatpush1.msra.mxu0 %v280
    %450 = vmatprep.subr.mxu0 0.0
    %451 = vmatpush1.msra.mxu0 %v279
    %452 = vmatprep.subr.mxu0 0.0
    %453 = vmatpush1.msra.mxu0 %v278
    %454 = vmatprep.subr.mxu0 0.0
    %455 = vmatpush1.msra.mxu0 %v277
    %456 = vmatprep.subr.mxu0 0.0
    %457 = vmatpush1.msra.mxu0 %v276
    %458 = vmatprep.subr.mxu0 0.0
    %459 = vmatpush1.msra.mxu0 %v275
    %460 = vmatprep.subr.mxu0 0.0
    %461 = vmatpush2.msra.mxu0 %v306
    %462 = vmatprep.subr.mxu0 0.0
    %463 = vmatpush2.msra.mxu0 %v305
    %464 = vmatprep.subr.mxu0 0.0
    %465 = vmatpush2.msra.mxu0 %v304
    %466 = vmatprep.subr.mxu0 0.0
    %467 = vmatpush2.msra.mxu0 %v303
    %468 = vmatprep.subr.mxu0 0.0
    %469 = vmatpush2.msra.mxu0 %v302
    %470 = vmatprep.subr.mxu0 0.0
    %471 = vmatpush2.msra.mxu0 %v301
    %472 = vmatprep.subr.mxu0 0.0
    %473 = vmatpush2.msra.mxu0 %v300
    %474 = vmatprep.subr.mxu0 0.0
    %475 = vmatpush2.msra.mxu0 %v299
    %476 = vmatprep.subr.mxu0 0.0
    %477 = vmatpush2.msra.mxu0 %v298
    %478 = vmatprep.subr.mxu0 0.0
    %479 = vmatpush2.msra.mxu0 %v297
    %480 = vmatprep.subr.mxu0 0.0
    %481 = vmatpush2.msra.mxu0 %v296
    %482 = vmatprep.subr.mxu0 0.0
    %483 = vmatpush2.msra.mxu0 %v295
    %484 = vmatprep.subr.mxu0 0.0
    %485 = vmatpush2.msra.mxu0 %v294
    %486 = vmatprep.subr.mxu0 0.0
    %487 = vmatpush2.msra.mxu0 %v293
    %488 = vmatprep.subr.mxu0 0.0
    %489 = vmatpush2.msra.mxu0 %v292
    %490 = vmatprep.subr.mxu0 0.0
    %491 = vmatpush2.msra.mxu0 %v291
    %492 = vmatprep.mubr.f32.mxu0 %v413
    %493 = vmatmul.mubr.f32.gmra.mxu0 %v407
    %v494 = vpop.f32.mrf.mxu0
    %v495 = vadd.f32 0.0, %v494
    %v496 = vpop.f32.mrf.mxu0
    %497 = vdwg.mxu0
    %498 = vmatprep.subr.mxu0 0.0
    %499 = vmatpush1.msra.mxu0 %v290
    %500 = vmatprep.subr.mxu0 0.0
    %501 = vmatpush1.msra.mxu0 %v289
    %502 = vmatprep.subr.mxu0 0.0
    %503 = vmatpush1.msra.mxu0 %v288
    %504 = vmatprep.subr.mxu0 0.0
    %505 = vmatpush1.msra.mxu0 %v287
    %506 = vmatprep.subr.mxu0 0.0
    %507 = vmatpush1.msra.mxu0 %v286
    %508 = vmatprep.subr.mxu0 0.0
    %509 = vmatpush1.msra.mxu0 %v285
    %510 = vmatprep.subr.mxu0 0.0
    %511 = vmatpush1.msra.mxu0 %v284
    %512 = vmatprep.subr.mxu0 0.0
    %513 = vmatpush1.msra.mxu0 %v283
    %514 = vmatprep.subr.mxu0 0.0
    %515 = vmatpush1.msra.mxu0 %v282
    %516 = vmatprep.subr.mxu0 0.0
    %517 = vmatpush1.msra.mxu0 %v281
    %518 = vmatprep.subr.mxu0 0.0
    %519 = vmatpush1.msra.mxu0 %v280
    %520 = vmatprep.subr.mxu0 0.0
    %521 = vmatpush1.msra.mxu0 %v279
    %522 = vmatprep.subr.mxu0 0.0
    %523 = vmatpush1.msra.mxu0 %v278
    %524 = vmatprep.subr.mxu0 0.0
    %525 = vmatpush1.msra.mxu0 %v277
    %526 = vmatprep.subr.mxu0 0.0
    %527 = vmatpush1.msra.mxu0 %v276
    %528 = vmatprep.subr.mxu0 0.0
    %529 = vmatpush1.msra.mxu0 %v275
    %530 = vmatprep.subr.mxu0 0.0
    %531 = vmatpush2.msra.mxu0 %v306
    %532 = vmatprep.subr.mxu0 0.0
    %533 = vmatpush2.msra.mxu0 %v305
    %534 = vmatprep.subr.mxu0 0.0
    %535 = vmatpush2.msra.mxu0 %v304
    %536 = vmatprep.subr.mxu0 0.0
    %537 = vmatpush2.msra.mxu0 %v303
    %538 = vmatprep.subr.mxu0 0.0
    %539 = vmatpush2.msra.mxu0 %v302
    %540 = vmatprep.subr.mxu0 0.0
    %541 = vmatpush2.msra.mxu0 %v301
    %542 = vmatprep.subr.mxu0 0.0
    %543 = vmatpush2.msra.mxu0 %v300
    %544 = vmatprep.subr.mxu0 0.0
    %545 = vmatpush2.msra.mxu0 %v299
    %546 = vmatprep.subr.mxu0 0.0
    %547 = vmatpush2.msra.mxu0 %v298
    %548 = vmatprep.subr.mxu0 0.0
    %549 = vmatpush2.msra.mxu0 %v297
    %550 = vmatprep.subr.mxu0 0.0
    %551 = vmatpush2.msra.mxu0 %v296
    %552 = vmatprep.subr.mxu0 0.0
    %553 = vmatpush2.msra.mxu0 %v295
    %554 = vmatprep.subr.mxu0 0.0
    %555 = vmatpush2.msra.mxu0 %v294
    %556 = vmatprep.subr.mxu0 0.0
    %557 = vmatpush2.msra.mxu0 %v293
    %558 = vmatprep.subr.mxu0 0.0
    %559 = vmatpush2.msra.mxu0 %v292
    %560 = vmatprep.subr.mxu0 0.0
    %561 = vmatpush2.msra.mxu0 %v291
    %562 = vmatprep.mubr.f32.mxu0 %v427
    %563 = vmatmul.mubr.f32.gmra.mxu0 %v421
    %v564 = vpop.f32.mrf.mxu0
    %v565 = vadd.f32 0.0, %v564
    %v566 = vpop.f32.mrf.mxu0
    %567 = vdwg.mxu0
    %v568 = vmul.f32 %v495, %v311
    %v569 = vmul.f32 %v568, 2.0
    %v570 = vmul.f32 %v569, %v495
    %v571 = vsub.f32 %v565, %v570
    %v572 = vmul.f32 %v571, %v311
    %v573 = vmul.f32 %v568, %v568
    %v574 = vadd.f32 %v572, %v573
    %v575 = vadd.f32 %v574, 1e-05
    %v576 = vrsqrt.pop %v575
    %vm577 = vcmask 130048
    %v579 = vsel %vm577, %v568, 0
    %581 = vmatprep.subr.mxu0 0.0
    %582 = vmatpush1.msra.mxu0 0.0
    %583 = vmatprep.subr.mxu0 0.0
    %584 = vmatpush1.msra.mxu0 0.0
    %585 = vmatprep.subr.mxu0 0.0
    %586 = vmatpush1.msra.mxu0 0.0
    %587 = vmatprep.subr.mxu0 0.0
    %588 = vmatpush1.msra.mxu0 0.0
    %589 = vmatprep.subr.mxu0 0.0
    %590 = vmatpush1.msra.mxu0 0.0
    %591 = vmatprep.subr.mxu0 0.0
    %592 = vmatpush1.msra.mxu0 0.0
    %593 = vmatprep.subr.mxu0 0.0
    %594 = vmatpush1.msra.mxu0 0.0
    %595 = vmatprep.subr.mxu0 0.0
    %596 = vmatpush1.msra.mxu0 0.0
    %597 = vmatprep.subr.mxu0 0.0
    %598 = vmatpush1.msra.mxu0 0.0
    %599 = vmatprep.subr.mxu0 0.0
    %600 = vmatpush1.msra.mxu0 0.0
    %601 = vmatprep.subr.mxu0 0.0
    %602 = vmatpush1.msra.mxu0 0.0
    %603 = vmatprep.subr.mxu0 0.0
    %604 = vmatpush1.msra.mxu0 0.0
    %605 = vmatprep.subr.mxu0 0.0
    %606 = vmatpush1.msra.mxu0 0.0
    %607 = vmatprep.subr.mxu0 0.0
    %608 = vmatpush1.msra.mxu0 0.0
    %609 = vmatprep.subr.mxu0 %v310
    %610 = vmatpush1.msra.mxu0 %v309
    %611 = vmatprep.subr.mxu0 %v308
    %612 = vmatpush1.msra.mxu0 %v307
    %613 = vmatprep.subr.mxu0 0.0
    %614 = vmatpush2.msra.mxu0 0.0
    %615 = vmatprep.subr.mxu0 0.0
    %616 = vmatpush2.msra.mxu0 0.0
    %617 = vmatprep.subr.mxu0 0.0
    %618 = vmatpush2.msra.mxu0 0.0
    %619 = vmatprep.subr.mxu0 0.0
    %620 = vmatpush2.msra.mxu0 0.0
    %621 = vmatprep.subr.mxu0 0.0
    %622 = vmatpush2.msra.mxu0 0.0
    %623 = vmatprep.subr.mxu0 0.0
    %624 = vmatpush2.msra.mxu0 0.0
    %625 = vmatprep.subr.mxu0 0.0
    %626 = vmatpush2.msra.mxu0 0.0
    %627 = vmatprep.subr.mxu0 0.0
    %628 = vmatpush2.msra.mxu0 0.0
    %629 = vmatprep.subr.mxu0 0.0
    %630 = vmatpush2.msra.mxu0 0.0
    %631 = vmatprep.subr.mxu0 0.0
    %632 = vmatpush2.msra.mxu0 0.0
    %633 = vmatprep.subr.mxu0 0.0
    %634 = vmatpush2.msra.mxu0 0.0
    %635 = vmatprep.subr.mxu0 0.0
    %636 = vmatpush2.msra.mxu0 0.0
    %637 = vmatprep.subr.mxu0 0.0
    %638 = vmatpush2.msra.mxu0 0.0
    %639 = vmatprep.subr.mxu0 0.0
    %640 = vmatpush2.msra.mxu0 0.0
    %641 = vmatprep.subr.mxu0 0.0
    %642 = vmatpush2.msra.mxu0 0.0
    %643 = vmatprep.subr.mxu0 0.0
    %644 = vmatpush2.msra.mxu0 0.0
    %645 = vmatprep.mubr.f32.mxu0 0.0
    %646 = vmatmul.mubr.f32.gmra.mxu0 %v579
    %v647 = vpop.f32.mrf.mxu0
    %v648 = vadd.f32 0.0, %v647
    %v649 = vpop.f32.mrf.mxu0
    %v650 = vadd.f32 0.0, %v649
    %651 = vdwg.mxu0
    %v653 = vsel %vm577, %v576, 0
    %655 = vmatprep.subr.mxu0 0.0
    %656 = vmatpush1.msra.mxu0 0.0
    %657 = vmatprep.subr.mxu0 0.0
    %658 = vmatpush1.msra.mxu0 0.0
    %659 = vmatprep.subr.mxu0 0.0
    %660 = vmatpush1.msra.mxu0 0.0
    %661 = vmatprep.subr.mxu0 0.0
    %662 = vmatpush1.msra.mxu0 0.0
    %663 = vmatprep.subr.mxu0 0.0
    %664 = vmatpush1.msra.mxu0 0.0
    %665 = vmatprep.subr.mxu0 0.0
    %666 = vmatpush1.msra.mxu0 0.0
    %667 = vmatprep.subr.mxu0 0.0
    %668 = vmatpush1.msra.mxu0 0.0
    %669 = vmatprep.subr.mxu0 0.0
    %670 = vmatpush1.msra.mxu0 0.0
    %671 = vmatprep.subr.mxu0 0.0
    %672 = vmatpush1.msra.mxu0 0.0
    %673 = vmatprep.subr.mxu0 0.0
    %674 = vmatpush1.msra.mxu0 0.0
    %675 = vmatprep.subr.mxu0 0.0
    %676 = vmatpush1.msra.mxu0 0.0
    %677 = vmatprep.subr.mxu0 0.0
    %678 = vmatpush1.msra.mxu0 0.0
    %679 = vmatprep.subr.mxu0 0.0
    %680 = vmatpush1.msra.mxu0 0.0
    %681 = vmatprep.subr.mxu0 0.0
    %682 = vmatpush1.msra.mxu0 0.0
    %683 = vmatprep.subr.mxu0 %v310
    %684 = vmatpush1.msra.mxu0 %v309
    %685 = vmatprep.subr.mxu0 %v308
    %686 = vmatpush1.msra.mxu0 %v307
    %687 = vmatprep.subr.mxu0 0.0
    %688 = vmatpush2.msra.mxu0 0.0
    %689 = vmatprep.subr.mxu0 0.0
    %690 = vmatpush2.msra.mxu0 0.0
    %691 = vmatprep.subr.mxu0 0.0
    %692 = vmatpush2.msra.mxu0 0.0
    %693 = vmatprep.subr.mxu0 0.0
    %694 = vmatpush2.msra.mxu0 0.0
    %695 = vmatprep.subr.mxu0 0.0
    %696 = vmatpush2.msra.mxu0 0.0
    %697 = vmatprep.subr.mxu0 0.0
    %698 = vmatpush2.msra.mxu0 0.0
    %699 = vmatprep.subr.mxu0 0.0
    %700 = vmatpush2.msra.mxu0 0.0
    %701 = vmatprep.subr.mxu0 0.0
    %702 = vmatpush2.msra.mxu0 0.0
    %703 = vmatprep.subr.mxu0 0.0
    %704 = vmatpush2.msra.mxu0 0.0
    %705 = vmatprep.subr.mxu0 0.0
    %706 = vmatpush2.msra.mxu0 0.0
    %707 = vmatprep.subr.mxu0 0.0
    %708 = vmatpush2.msra.mxu0 0.0
    %709 = vmatprep.subr.mxu0 0.0
    %710 = vmatpush2.msra.mxu0 0.0
    %711 = vmatprep.subr.mxu0 0.0
    %712 = vmatpush2.msra.mxu0 0.0
    %713 = vmatprep.subr.mxu0 0.0
    %714 = vmatpush2.msra.mxu0 0.0
    %715 = vmatprep.subr.mxu0 0.0
    %716 = vmatpush2.msra.mxu0 0.0
    %717 = vmatprep.subr.mxu0 0.0
    %718 = vmatpush2.msra.mxu0 0.0
    %719 = vmatprep.mubr.f32.mxu0 0.0
    %720 = vmatmul.mubr.f32.gmra.mxu0 %v653
    %v721 = vpop.f32.mrf.mxu0
    %v722 = vadd.f32 0.0, %v721
    %v723 = vpop.f32.mrf.mxu0
    %v724 = vadd.f32 0.0, %v723
    %725 = vdwg.mxu0
    %v726 = vlaneseq
    %v727 = vshrl.u32 %v726, 7
    %v728 = vsub.s32 0, %v727
    %v729 = vrot.slane %v648, %v728
    %v730 = vlaneseq
    %v731 = vshrl.u32 %v730, 7
    %v732 = vsub.s32 0, %v731
    %v733 = vrot.slane %v650, %v732
    %v734 = vsub.f32 %v398, %v729
    %v735 = vsub.f32 %v400, %v733
    %v736 = vlaneseq
    %v737 = vshrl.u32 %v736, 7
    %v738 = vsub.s32 0, %v737
    %v739 = vrot.slane %v722, %v738
    %v740 = vlaneseq
    %v741 = vshrl.u32 %v740, 7
    %v742 = vsub.s32 0, %v741
    %v743 = vrot.slane %v724, %v742
    %v744 = vmul.f32 %v734, %v739
    %v745 = vmul.f32 %v735, %v743
    %v746 = vmul.f32 %v744, %v119
    %v747 = vmul.f32 %v745, %v121
    %v748 = vadd.f32 %v746, %v194
    %v749 = vadd.f32 %v747, %v196
    %v750 = vmax.f32 %v748, 0.0
    %v751 = vmax.f32 %v749, 0.0
    %v752 = vmin.f32 %v748, 0.0
    %v753 = vmin.f32 %v749, 0.0
    %v754 = vmul.f32 %v269, %v752
    %v755 = vmul.f32 %v271, %v753
    %v756 = vadd.f32 %v750, %v754
    %v757 = vadd.f32 %v751, %v755
    %758 = vst [vmem:[#allocation2] sm:$0xff] %v756
    %759 = vst [vmem:[#allocation2 + $0x8] sm:$0xff] %v757
    %s760 = scalar_lea.vmem %s0, 80
    %v761 = vld [vmem:[%s760] sm:$0xff]
    %v762 = vld [vmem:[%s760 + $0x8] sm:$0xff]
    %v763 = vld [vmem:[%s760 + $0x10] sm:$0xff]
    %v764 = vld [vmem:[%s760 + $0x18] sm:$0xff]
    %v765 = vld [vmem:[%s760 + $0x20] sm:$0xff]
    %v766 = vld [vmem:[%s760 + $0x28] sm:$0xff]
    %v767 = vld [vmem:[%s760 + $0x30] sm:$0xff]
    %v768 = vld [vmem:[%s760 + $0x38] sm:$0xff]
    %v769 = vld [vmem:[%s760 + $0x40] sm:$0xff]
    %v770 = vld [vmem:[%s760 + $0x48] sm:$0xff]
    %771 = vmatprep.subr.mxu0 0.0
    %772 = vmatpush1.msra.mxu0 0.0
    %773 = vmatprep.subr.mxu0 0.0
    %774 = vmatpush1.msra.mxu0 0.0
    %775 = vmatprep.subr.mxu0 0.0
    %776 = vmatpush1.msra.mxu0 0.0
    %777 = vmatprep.subr.mxu0 0.0
    %778 = vmatpush1.msra.mxu0 0.0
    %779 = vmatprep.subr.mxu0 0.0
    %780 = vmatpush1.msra.mxu0 0.0
    %781 = vmatprep.subr.mxu0 0.0
    %782 = vmatpush1.msra.mxu0 0.0
    %783 = vmatprep.subr.mxu0 0.0
    %784 = vmatpush1.msra.mxu0 0.0
    %785 = vmatprep.subr.mxu0 0.0
    %786 = vmatpush1.msra.mxu0 0.0
    %787 = vmatprep.subr.mxu0 0.0
    %788 = vmatpush1.msra.mxu0 0.0
    %789 = vmatprep.subr.mxu0 0.0
    %790 = vmatpush1.msra.mxu0 0.0
    %791 = vmatprep.subr.mxu0 0.0
    %792 = vmatpush1.msra.mxu0 0.0
    %793 = vmatprep.subr.mxu0 %v770
    %794 = vmatpush1.msra.mxu0 %v769
    %795 = vmatprep.subr.mxu0 %v768
    %796 = vmatpush1.msra.mxu0 %v767
    %797 = vmatprep.subr.mxu0 %v766
    %798 = vmatpush1.msra.mxu0 %v765
    %799 = vmatprep.subr.mxu0 %v764
    %800 = vmatpush1.msra.mxu0 %v763
    %801 = vmatprep.subr.mxu0 %v762
    %802 = vmatpush1.msra.mxu0 %v761
    %803 = vmatprep.subr.mxu0 0.0
    %804 = vmatpush2.msra.mxu0 0.0
    %805 = vmatprep.subr.mxu0 0.0
    %806 = vmatpush2.msra.mxu0 0.0
    %807 = vmatprep.subr.mxu0 0.0
    %808 = vmatpush2.msra.mxu0 0.0
    %809 = vmatprep.subr.mxu0 0.0
    %810 = vmatpush2.msra.mxu0 0.0
    %811 = vmatprep.subr.mxu0 0.0
    %812 = vmatpush2.msra.mxu0 0.0
    %813 = vmatprep.subr.mxu0 0.0
    %814 = vmatpush2.msra.mxu0 0.0
    %815 = vmatprep.subr.mxu0 0.0
    %816 = vmatpush2.msra.mxu0 0.0
    %817 = vmatprep.subr.mxu0 0.0
    %818 = vmatpush2.msra.mxu0 0.0
    %819 = vmatprep.subr.mxu0 0.0
    %820 = vmatpush2.msra.mxu0 0.0
    %821 = vmatprep.subr.mxu0 0.0
    %822 = vmatpush2.msra.mxu0 0.0
    %823 = vmatprep.subr.mxu0 0.0
    %824 = vmatpush2.msra.mxu0 0.0
    %825 = vmatprep.subr.mxu0 0.0
    %826 = vmatpush2.msra.mxu0 0.0
    %827 = vmatprep.subr.mxu0 0.0
    %828 = vmatpush2.msra.mxu0 0.0
    %829 = vmatprep.subr.mxu0 0.0
    %830 = vmatpush2.msra.mxu0 0.0
    %831 = vmatprep.subr.mxu0 0.0
    %832 = vmatpush2.msra.mxu0 0.0
    %833 = vmatprep.subr.mxu0 0.0
    %834 = vmatpush2.msra.mxu0 0.0
    %835 = vmatprep.mubr.f32.mxu0 0.0
    %836 = vmatmul.mubr.f32.gmra.mxu0 %v329
    %v837 = vpop.f32.mrf.mxu0
    %v838 = vadd.f32 %v325, %v837
    %v839 = vpop.f32.mrf.mxu0
    %v840 = vadd.f32 %v325, %v839
    %841 = vdwg.mxu0
    %v842 = vrot.slane %v838, 4
    %v843 = vadd.f32 %v838, %v842
    %v844 = vrot.slane %v843, 2
    %v845 = vadd.f32 %v843, %v844
    %v846 = vrot.slane %v845, 1
    %v847 = vadd.f32 %v845, %v846
    %v848 = vrot.slane %v840, 4
    %v849 = vadd.f32 %v840, %v848
    %v850 = vrot.slane %v849, 2
    %v851 = vadd.f32 %v849, %v850
    %v852 = vrot.slane %v851, 1
    %v853 = vadd.f32 %v851, %v852
    %v854 = vmul.f32 %v838, %v838
    %v855 = vmul.f32 %v840, %v840
    %v856 = vrot.slane %v854, 4
    %v857 = vadd.f32 %v854, %v856
    %v858 = vrot.slane %v857, 2
    %v859 = vadd.f32 %v857, %v858
    %v860 = vrot.slane %v859, 1
    %v861 = vadd.f32 %v859, %v860
    %v862 = vrot.slane %v855, 4
    %v863 = vadd.f32 %v855, %v862
    %v864 = vrot.slane %v863, 2
    %v865 = vadd.f32 %v863, %v864
    %v866 = vrot.slane %v865, 1
    %v867 = vadd.f32 %v865, %v866
    %868 = vmatprep.subr.mxu0 0.0
    %869 = vmatpush1.msra.mxu0 %v290
    %870 = vmatprep.subr.mxu0 0.0
    %871 = vmatpush1.msra.mxu0 %v289
    %872 = vmatprep.subr.mxu0 0.0
    %873 = vmatpush1.msra.mxu0 %v288
    %874 = vmatprep.subr.mxu0 0.0
    %875 = vmatpush1.msra.mxu0 %v287
    %876 = vmatprep.subr.mxu0 0.0
    %877 = vmatpush1.msra.mxu0 %v286
    %878 = vmatprep.subr.mxu0 0.0
    %879 = vmatpush1.msra.mxu0 %v285
    %880 = vmatprep.subr.mxu0 0.0
    %881 = vmatpush1.msra.mxu0 %v284
    %882 = vmatprep.subr.mxu0 0.0
    %883 = vmatpush1.msra.mxu0 %v283
    %884 = vmatprep.subr.mxu0 0.0
    %885 = vmatpush1.msra.mxu0 %v282
    %886 = vmatprep.subr.mxu0 0.0
    %887 = vmatpush1.msra.mxu0 %v281
    %888 = vmatprep.subr.mxu0 0.0
    %889 = vmatpush1.msra.mxu0 %v280
    %890 = vmatprep.subr.mxu0 0.0
    %891 = vmatpush1.msra.mxu0 %v279
    %892 = vmatprep.subr.mxu0 0.0
    %893 = vmatpush1.msra.mxu0 %v278
    %894 = vmatprep.subr.mxu0 0.0
    %895 = vmatpush1.msra.mxu0 %v277
    %896 = vmatprep.subr.mxu0 0.0
    %897 = vmatpush1.msra.mxu0 %v276
    %898 = vmatprep.subr.mxu0 0.0
    %899 = vmatpush1.msra.mxu0 %v275
    %900 = vmatprep.subr.mxu0 0.0
    %901 = vmatpush2.msra.mxu0 %v306
    %902 = vmatprep.subr.mxu0 0.0
    %903 = vmatpush2.msra.mxu0 %v305
    %904 = vmatprep.subr.mxu0 0.0
    %905 = vmatpush2.msra.mxu0 %v304
    %906 = vmatprep.subr.mxu0 0.0
    %907 = vmatpush2.msra.mxu0 %v303
    %908 = vmatprep.subr.mxu0 0.0
    %909 = vmatpush2.msra.mxu0 %v302
    %910 = vmatprep.subr.mxu0 0.0
    %911 = vmatpush2.msra.mxu0 %v301
    %912 = vmatprep.subr.mxu0 0.0
    %913 = vmatpush2.msra.mxu0 %v300
    %914 = vmatprep.subr.mxu0 0.0
    %915 = vmatpush2.msra.mxu0 %v299
    %916 = vmatprep.subr.mxu0 0.0
    %917 = vmatpush2.msra.mxu0 %v298
    %918 = vmatprep.subr.mxu0 0.0
    %919 = vmatpush2.msra.mxu0 %v297
    %920 = vmatprep.subr.mxu0 0.0
    %921 = vmatpush2.msra.mxu0 %v296
    %922 = vmatprep.subr.mxu0 0.0
    %923 = vmatpush2.msra.mxu0 %v295
    %924 = vmatprep.subr.mxu0 0.0
    %925 = vmatpush2.msra.mxu0 %v294
    %926 = vmatprep.subr.mxu0 0.0
    %927 = vmatpush2.msra.mxu0 %v293
    %928 = vmatprep.subr.mxu0 0.0
    %929 = vmatpush2.msra.mxu0 %v292
    %930 = vmatprep.subr.mxu0 0.0
    %931 = vmatpush2.msra.mxu0 %v291
    %932 = vmatprep.mubr.f32.mxu0 %v853
    %933 = vmatmul.mubr.f32.gmra.mxu0 %v847
    %v934 = vpop.f32.mrf.mxu0
    %v935 = vadd.f32 0.0, %v934
    %v936 = vpop.f32.mrf.mxu0
    %937 = vdwg.mxu0
    %938 = vmatprep.subr.mxu0 0.0
    %939 = vmatpush1.msra.mxu0 %v290
    %940 = vmatprep.subr.mxu0 0.0
    %941 = vmatpush1.msra.mxu0 %v289
    %942 = vmatprep.subr.mxu0 0.0
    %943 = vmatpush1.msra.mxu0 %v288
    %944 = vmatprep.subr.mxu0 0.0
    %945 = vmatpush1.msra.mxu0 %v287
    %946 = vmatprep.subr.mxu0 0.0
    %947 = vmatpush1.msra.mxu0 %v286
    %948 = vmatprep.subr.mxu0 0.0
    %949 = vmatpush1.msra.mxu0 %v285
    %950 = vmatprep.subr.mxu0 0.0
    %951 = vmatpush1.msra.mxu0 %v284
    %952 = vmatprep.subr.mxu0 0.0
    %953 = vmatpush1.msra.mxu0 %v283
    %954 = vmatprep.subr.mxu0 0.0
    %955 = vmatpush1.msra.mxu0 %v282
    %956 = vmatprep.subr.mxu0 0.0
    %957 = vmatpush1.msra.mxu0 %v281
    %958 = vmatprep.subr.mxu0 0.0
    %959 = vmatpush1.msra.mxu0 %v280
    %960 = vmatprep.subr.mxu0 0.0
    %961 = vmatpush1.msra.mxu0 %v279
    %962 = vmatprep.subr.mxu0 0.0
    %963 = vmatpush1.msra.mxu0 %v278
    %964 = vmatprep.subr.mxu0 0.0
    %965 = vmatpush1.msra.mxu0 %v277
    %966 = vmatprep.subr.mxu0 0.0
    %967 = vmatpush1.msra.mxu0 %v276
    %968 = vmatprep.subr.mxu0 0.0
    %969 = vmatpush1.msra.mxu0 %v275
    %970 = vmatprep.subr.mxu0 0.0
    %971 = vmatpush2.msra.mxu0 %v306
    %972 = vmatprep.subr.mxu0 0.0
    %973 = vmatpush2.msra.mxu0 %v305
    %974 = vmatprep.subr.mxu0 0.0
    %975 = vmatpush2.msra.mxu0 %v304
    %976 = vmatprep.subr.mxu0 0.0
    %977 = vmatpush2.msra.mxu0 %v303
    %978 = vmatprep.subr.mxu0 0.0
    %979 = vmatpush2.msra.mxu0 %v302
    %980 = vmatprep.subr.mxu0 0.0
    %981 = vmatpush2.msra.mxu0 %v301
    %982 = vmatprep.subr.mxu0 0.0
    %983 = vmatpush2.msra.mxu0 %v300
    %984 = vmatprep.subr.mxu0 0.0
    %985 = vmatpush2.msra.mxu0 %v299
    %986 = vmatprep.subr.mxu0 0.0
    %987 = vmatpush2.msra.mxu0 %v298
    %988 = vmatprep.subr.mxu0 0.0
    %989 = vmatpush2.msra.mxu0 %v297
    %990 = vmatprep.subr.mxu0 0.0
    %991 = vmatpush2.msra.mxu0 %v296
    %992 = vmatprep.subr.mxu0 0.0
    %993 = vmatpush2.msra.mxu0 %v295
    %994 = vmatprep.subr.mxu0 0.0
    %995 = vmatpush2.msra.mxu0 %v294
    %996 = vmatprep.subr.mxu0 0.0
    %997 = vmatpush2.msra.mxu0 %v293
    %998 = vmatprep.subr.mxu0 0.0
    %999 = vmatpush2.msra.mxu0 %v292
    %1000 = vmatprep.subr.mxu0 0.0
    %1001 = vmatpush2.msra.mxu0 %v291
    %1002 = vmatprep.mubr.f32.mxu0 %v867
    %1003 = vmatmul.mubr.f32.gmra.mxu0 %v861
    %v1004 = vpop.f32.mrf.mxu0
    %v1005 = vadd.f32 0.0, %v1004
    %v1006 = vpop.f32.mrf.mxu0
    %1007 = vdwg.mxu0
    %v1008 = vmul.f32 %v935, %v311
    %v1009 = vmul.f32 %v1008, 2.0
    %v1010 = vmul.f32 %v1009, %v935
    %v1011 = vsub.f32 %v1005, %v1010
    %v1012 = vmul.f32 %v1011, %v311
    %v1013 = vmul.f32 %v1008, %v1008
    %v1014 = vadd.f32 %v1012, %v1013
    %v1015 = vadd.f32 %v1014, 1e-05
    %v1016 = vrsqrt.pop %v1015
    %v1018 = vsel %vm577, %v1008, 0
    %1020 = vmatprep.subr.mxu0 0.0
    %1021 = vmatpush1.msra.mxu0 0.0
    %1022 = vmatprep.subr.mxu0 0.0
    %1023 = vmatpush1.msra.mxu0 0.0
    %1024 = vmatprep.subr.mxu0 0.0
    %1025 = vmatpush1.msra.mxu0 0.0
    %1026 = vmatprep.subr.mxu0 0.0
    %1027 = vmatpush1.msra.mxu0 0.0
    %1028 = vmatprep.subr.mxu0 0.0
    %1029 = vmatpush1.msra.mxu0 0.0
    %1030 = vmatprep.subr.mxu0 0.0
    %1031 = vmatpush1.msra.mxu0 0.0
    %1032 = vmatprep.subr.mxu0 0.0
    %1033 = vmatpush1.msra.mxu0 0.0
    %1034 = vmatprep.subr.mxu0 0.0
    %1035 = vmatpush1.msra.mxu0 0.0
    %1036 = vmatprep.subr.mxu0 0.0
    %1037 = vmatpush1.msra.mxu0 0.0
    %1038 = vmatprep.subr.mxu0 0.0
    %1039 = vmatpush1.msra.mxu0 0.0
    %1040 = vmatprep.subr.mxu0 0.0
    %1041 = vmatpush1.msra.mxu0 0.0
    %1042 = vmatprep.subr.mxu0 0.0
    %1043 = vmatpush1.msra.mxu0 0.0
    %1044 = vmatprep.subr.mxu0 0.0
    %1045 = vmatpush1.msra.mxu0 0.0
    %1046 = vmatprep.subr.mxu0 0.0
    %1047 = vmatpush1.msra.mxu0 0.0
    %1048 = vmatprep.subr.mxu0 %v310
    %1049 = vmatpush1.msra.mxu0 %v309
    %1050 = vmatprep.subr.mxu0 %v308
    %1051 = vmatpush1.msra.mxu0 %v307
    %1052 = vmatprep.subr.mxu0 0.0
    %1053 = vmatpush2.msra.mxu0 0.0
    %1054 = vmatprep.subr.mxu0 0.0
    %1055 = vmatpush2.msra.mxu0 0.0
    %1056 = vmatprep.subr.mxu0 0.0
    %1057 = vmatpush2.msra.mxu0 0.0
    %1058 = vmatprep.subr.mxu0 0.0
    %1059 = vmatpush2.msra.mxu0 0.0
    %1060 = vmatprep.subr.mxu0 0.0
    %1061 = vmatpush2.msra.mxu0 0.0
    %1062 = vmatprep.subr.mxu0 0.0
    %1063 = vmatpush2.msra.mxu0 0.0
    %1064 = vmatprep.subr.mxu0 0.0
    %1065 = vmatpush2.msra.mxu0 0.0
    %1066 = vmatprep.subr.mxu0 0.0
    %1067 = vmatpush2.msra.mxu0 0.0
    %1068 = vmatprep.subr.mxu0 0.0
    %1069 = vmatpush2.msra.mxu0 0.0
    %1070 = vmatprep.subr.mxu0 0.0
    %1071 = vmatpush2.msra.mxu0 0.0
    %1072 = vmatprep.subr.mxu0 0.0
    %1073 = vmatpush2.msra.mxu0 0.0
    %1074 = vmatprep.subr.mxu0 0.0
    %1075 = vmatpush2.msra.mxu0 0.0
    %1076 = vmatprep.subr.mxu0 0.0
    %1077 = vmatpush2.msra.mxu0 0.0
    %1078 = vmatprep.subr.mxu0 0.0
    %1079 = vmatpush2.msra.mxu0 0.0
    %1080 = vmatprep.subr.mxu0 0.0
    %1081 = vmatpush2.msra.mxu0 0.0
    %1082 = vmatprep.subr.mxu0 0.0
    %1083 = vmatpush2.msra.mxu0 0.0
    %1084 = vmatprep.mubr.f32.mxu0 0.0
    %1085 = vmatmul.mubr.f32.gmra.mxu0 %v1018
    %v1086 = vpop.f32.mrf.mxu0
    %v1087 = vadd.f32 0.0, %v1086
    %v1088 = vpop.f32.mrf.mxu0
    %v1089 = vadd.f32 0.0, %v1088
    %1090 = vdwg.mxu0
    %v1092 = vsel %vm577, %v1016, 0
    %1094 = vmatprep.subr.mxu0 0.0
    %1095 = vmatpush1.msra.mxu0 0.0
    %1096 = vmatprep.subr.mxu0 0.0
    %1097 = vmatpush1.msra.mxu0 0.0
    %1098 = vmatprep.subr.mxu0 0.0
    %1099 = vmatpush1.msra.mxu0 0.0
    %1100 = vmatprep.subr.mxu0 0.0
    %1101 = vmatpush1.msra.mxu0 0.0
    %1102 = vmatprep.subr.mxu0 0.0
    %1103 = vmatpush1.msra.mxu0 0.0
    %1104 = vmatprep.subr.mxu0 0.0
    %1105 = vmatpush1.msra.mxu0 0.0
    %1106 = vmatprep.subr.mxu0 0.0
    %1107 = vmatpush1.msra.mxu0 0.0
    %1108 = vmatprep.subr.mxu0 0.0
    %1109 = vmatpush1.msra.mxu0 0.0
    %1110 = vmatprep.subr.mxu0 0.0
    %1111 = vmatpush1.msra.mxu0 0.0
    %1112 = vmatprep.subr.mxu0 0.0
    %1113 = vmatpush1.msra.mxu0 0.0
    %1114 = vmatprep.subr.mxu0 0.0
    %1115 = vmatpush1.msra.mxu0 0.0
    %1116 = vmatprep.subr.mxu0 0.0
    %1117 = vmatpush1.msra.mxu0 0.0
    %1118 = vmatprep.subr.mxu0 0.0
    %1119 = vmatpush1.msra.mxu0 0.0
    %1120 = vmatprep.subr.mxu0 0.0
    %1121 = vmatpush1.msra.mxu0 0.0
    %1122 = vmatprep.subr.mxu0 %v310
    %1123 = vmatpush1.msra.mxu0 %v309
    %1124 = vmatprep.subr.mxu0 %v308
    %1125 = vmatpush1.msra.mxu0 %v307
    %1126 = vmatprep.subr.mxu0 0.0
    %1127 = vmatpush2.msra.mxu0 0.0
    %1128 = vmatprep.subr.mxu0 0.0
    %1129 = vmatpush2.msra.mxu0 0.0
    %1130 = vmatprep.subr.mxu0 0.0
    %1131 = vmatpush2.msra.mxu0 0.0
    %1132 = vmatprep.subr.mxu0 0.0
    %1133 = vmatpush2.msra.mxu0 0.0
    %1134 = vmatprep.subr.mxu0 0.0
    %1135 = vmatpush2.msra.mxu0 0.0
    %1136 = vmatprep.subr.mxu0 0.0
    %1137 = vmatpush2.msra.mxu0 0.0
    %1138 = vmatprep.subr.mxu0 0.0
    %1139 = vmatpush2.msra.mxu0 0.0
    %1140 = vmatprep.subr.mxu0 0.0
    %1141 = vmatpush2.msra.mxu0 0.0
    %1142 = vmatprep.subr.mxu0 0.0
    %1143 = vmatpush2.msra.mxu0 0.0
    %1144 = vmatprep.subr.mxu0 0.0
    %1145 = vmatpush2.msra.mxu0 0.0
    %1146 = vmatprep.subr.mxu0 0.0
    %1147 = vmatpush2.msra.mxu0 0.0
    %1148 = vmatprep.subr.mxu0 0.0
    %1149 = vmatpush2.msra.mxu0 0.0
    %1150 = vmatprep.subr.mxu0 0.0
    %1151 = vmatpush2.msra.mxu0 0.0
    %1152 = vmatprep.subr.mxu0 0.0
    %1153 = vmatpush2.msra.mxu0 0.0
    %1154 = vmatprep.subr.mxu0 0.0
    %1155 = vmatpush2.msra.mxu0 0.0
    %1156 = vmatprep.subr.mxu0 0.0
    %1157 = vmatpush2.msra.mxu0 0.0
    %1158 = vmatprep.mubr.f32.mxu0 0.0
    %1159 = vmatmul.mubr.f32.gmra.mxu0 %v1092
    %v1160 = vpop.f32.mrf.mxu0
    %v1161 = vadd.f32 0.0, %v1160
    %v1162 = vpop.f32.mrf.mxu0
    %v1163 = vadd.f32 0.0, %v1162
    %1164 = vdwg.mxu0
    %v1165 = vlaneseq
    %v1166 = vshrl.u32 %v1165, 7
    %v1167 = vsub.s32 0, %v1166
    %v1168 = vrot.slane %v1087, %v1167
    %v1169 = vlaneseq
    %v1170 = vshrl.u32 %v1169, 7
    %v1171 = vsub.s32 0, %v1170
    %v1172 = vrot.slane %v1089, %v1171
    %v1173 = vsub.f32 %v838, %v1168
    %v1174 = vsub.f32 %v840, %v1172
    %v1175 = vlaneseq
    %v1176 = vshrl.u32 %v1175, 7
    %v1177 = vsub.s32 0, %v1176
    %v1178 = vrot.slane %v1161, %v1177
    %v1179 = vlaneseq
    %v1180 = vshrl.u32 %v1179, 7
    %v1181 = vsub.s32 0, %v1180
    %v1182 = vrot.slane %v1163, %v1181
    %v1183 = vmul.f32 %v1173, %v1178
    %v1184 = vmul.f32 %v1174, %v1182
    %v1185 = vmul.f32 %v1183, %v119
    %v1186 = vmul.f32 %v1184, %v121
    %v1187 = vadd.f32 %v1185, %v194
    %v1188 = vadd.f32 %v1186, %v196
    %v1189 = vmax.f32 %v1187, 0.0
    %v1190 = vmax.f32 %v1188, 0.0
    %v1191 = vmin.f32 %v1187, 0.0
    %v1192 = vmin.f32 %v1188, 0.0
    %v1193 = vmul.f32 %v269, %v1191
    %v1194 = vmul.f32 %v271, %v1192
    %v1195 = vadd.f32 %v1189, %v1193
    %v1196 = vadd.f32 %v1190, %v1194
    %s1197 = scalar_lea.vmem [#allocation2], 16
    %1198 = vst [vmem:[%s1197] sm:$0xff] %v1195
    %1199 = vst [vmem:[%s1197 + $0x8] sm:$0xff] %v1196
    // Predicated region
    $region42: #{tpu_custom_call.1} parent=1 // pred_check
      _
    $region43: #{tpu_custom_call.1} parent=1 // pred_check_branch
      %1201 = sbr.rel (0) target = $region45
    $region44: #{tpu_custom_call.1} parent=1 // pred_region
      %s1203 = ssub.s32 512, 512
      %1204 = vsyncadd [#allocation3], %s1203
      %s1205 = sshll.u32 [#allocation2], 4
      %s1206 = int_to_ptr.vmem [resolvable:$true] %s1205
      %1211 = dma.vmem_to_hbm [thread:$0]  %s1206, 512, %s10, [#allocation3], 256, 256, 16
    $region45: #{tpu_custom_call.1} parent=1 // pred_fallthru
      _
    // Predicated region
    $region46: #{tpu_custom_call.1} parent=1 // pred_check
      _
    $region47: #{tpu_custom_call.1} parent=1 // pred_check_branch
      %1213 = sbr.rel (0) target = $region49
    $region48: #{tpu_custom_call.1} parent=1 // pred_region
      %1214 = dma.done [#allocation3], 512
    $region49: #{tpu_custom_call.1} parent=1 // pred_fallthru
      _
    %1215 = vsyncpa [#allocation3], 1

</llo_original>
